<compile_context>
chip_gen: v7x
topology: tpu7x:2x2x1
jax: 0.10.0
libtpu: 0.0.40
codegen_flags: <defaults>
</compile_context>

<pallas_src>
import functools

import jax
import jax.numpy as jnp
from jax.experimental import pallas as pl
from jax.experimental.pallas import tpu as pltpu

NEG_BIG = -1e30  # finite pad-lane bias for the padded 3-way softmax (must NOT be -inf)

# Row indices inside the packed vector slab V_slab (V_ROWS, d_h), all f32.
V_EPS = 0                                   # broadcast (1 + gin_eps)
V_B1X, V_B2X, V_GSX, V_BSX = 1, 2, 3, 4     # contextual encoder biases / FWT samples
V_B1U, V_B2U, V_GSU, V_BSU = 5, 6, 7, 8     # topological encoder biases / FWT samples
V_BZ, V_BA1, V_BA2 = 9, 10, 11              # projection bias, attn fc1 bias, padded fc2 bias
V_ROWS = 12


def _w_offsets(d_x, d_u, d_z, d_h):
    """Row offsets inside the packed (k_rows, d_h) bf16 weight slab.

    The two tiny first-layer weights go first so every d_h-row weight starts on a
    16-row (bf16 sublane-tile) boundary when d_x + d_u is a multiple of 16.
    """
    o_w1x = 0
    o_w1u = o_w1x + d_x
    o_w2x = o_w1u + d_u
    o_w2u = o_w2x + d_h
    o_wa1 = o_w2u + d_h
    o_wa2 = o_wa1 + 3 * d_h
    o_wz = o_wa2 + d_h
    k_rows = o_wz + d_z
    return o_w1x, o_w1u, o_w2x, o_w2u, o_wa1, o_wa2, o_wz, k_rows


def _kernel(A_ref, XU_ref, AUX_ref, W_ref, V_ref, out_ref, *, dims, n_per_step):
    d_x, d_u, d_z, d_h = dims
    d_xu = d_x + d_u
    N = n_per_step
    o_w1x, o_w1u, o_w2x, o_w2u, o_wa1, o_wa2, o_wz, _ = _w_offsets(d_x, d_u, d_z, d_h)

    A = A_ref[0]                                   # (N, N)     bf16 block-diag adjacency
    XU = XU_ref[0]                                 # (N, d_xu)  bf16 [X | U]
    aux = AUX_ref[0]                               # (G, N+d_z) f32  [pool matrix | S]
    pool = aux[:, :N].astype(jnp.bfloat16)         # (G, N) mean-pool matrix
    s16 = aux[:, N:N + d_z].astype(jnp.bfloat16)   # (G, d_z) diffusion embeddings

    # Fused GIN sum-aggregation for BOTH encoders: one full-width bf16 MXU pass over
    # the G-graph block-diagonal adjacency; (1 + eps) * x self-term added in f32.
    agg = jnp.dot(A, XU, preferred_element_type=jnp.float32)
    agg = agg + XU.astype(jnp.float32) * V_ref[V_EPS:V_EPS + 1, :d_xu]
    agg16 = agg.astype(jnp.bfloat16)

    def encoder(feat16, o_w1, d_in, o_w2, v_b1, v_b2, v_g, v_b):
        w1 = W_ref[o_w1:o_w1 + d_in, :]            # (d_in, d_h) bf16
        w2 = W_ref[o_w2:o_w2 + d_h, :]             # (d_h, d_h)  bf16
        h = jnp.dot(feat16, w1, preferred_element_type=jnp.float32) + V_ref[v_b1:v_b1 + 1, :]
        h = jnp.maximum(h, 0.0)
        h = (jnp.dot(h.astype(jnp.bfloat16), w2, preferred_element_type=jnp.float32)
             + V_ref[v_b2:v_b2 + 1, :])
        # FeatureWiseTransformationLayer (one Normal rsample per forward, drawn in glue).
        h = V_ref[v_g:v_g + 1, :] * h + V_ref[v_b:v_b + 1, :]
        h = h * jax.nn.sigmoid(h)                  # SiLU in f32 (EUP logistic)
        # global_mean_pool over all G graphs of this step: (G, N) @ (N, d_h) on the MXU.
        return jnp.dot(pool, h.astype(jnp.bfloat16), preferred_element_type=jnp.float32)

    h_x = encoder(agg16[:, :d_x], o_w1x, d_x, o_w2x, V_B1X, V_B2X, V_GSX, V_BSX)
    h_u = encoder(agg16[:, d_x:d_xu], o_w1u, d_u, o_w2u, V_B1U, V_B2U, V_GSU, V_BSU)

    # MLPProjectionHead on the diffusion embeddings.
    h_z = (jnp.dot(s16, W_ref[o_wz:o_wz + d_z, :], preferred_element_type=jnp.float32)
           + V_ref[V_BZ:V_BZ + 1, :])

    # AttentionModule fc1: sum of three matmuls against wa1's three d_h-row blocks
    # (same math as concat([h_x, h_u, h_z]) @ wa1, without a lane concatenation).
    scores = (jnp.dot(h_x.astype(jnp.bfloat16), W_ref[o_wa1:o_wa1 + d_h, :],
                      preferred_element_type=jnp.float32)
              + jnp.dot(h_u.astype(jnp.bfloat16), W_ref[o_wa1 + d_h:o_wa1 + 2 * d_h, :],
                        preferred_element_type=jnp.float32)
              + jnp.dot(h_z.astype(jnp.bfloat16), W_ref[o_wa1 + 2 * d_h:o_wa1 + 3 * d_h, :],
                        preferred_element_type=jnp.float32)
              + V_ref[V_BA1:V_BA1 + 1, :])
    scores = jnp.maximum(scores, 0.0)

    # fc2 padded (d_h, 3) -> (d_h, d_h); pad lanes carry a large finite negative bias so
    # the lane-dense softmax is exactly the 3-way softmax (exp of pad lanes flushes to 0).
    logits = (jnp.dot(scores.astype(jnp.bfloat16), W_ref[o_wa2:o_wa2 + d_h, :],
                      preferred_element_type=jnp.float32)
              + V_ref[V_BA2:V_BA2 + 1, :])
    m = jnp.max(logits, axis=1, keepdims=True)
    e = jnp.exp(logits - m)
    alpha = e * pl.reciprocal(jnp.sum(e, axis=1, keepdims=True), approx=True)

    out_ref[...] = alpha[:, 0:1] * h_x + alpha[:, 1:2] * h_u + alpha[:, 2:3] * h_z


def prototypical_forward(A_b, XU, poolw, S, W_slab, V_slab, dims, *, graphs_per_step):
    """A_b: (B, n_g, n_g) bf16 per-graph adjacency (dst, src).
    XU:    (B, n_g, d_x + d_u) bf16 concatenated contextual/topological node features.
    poolw: (B, n_g) f32 mean-pool weights (1/|V_g| on valid rows, 0 on pads).
    S:     (B, d_z) f32 diffusion embeddings.
    W_slab:(k_rows, d_h) bf16 packed weights (see _w_offsets / pack_param_slabs).
    V_slab:(V_ROWS, d_h) f32 packed eps / biases / FWT samples / padded attn bias.
    """
    d_x, d_u, d_z, d_h = dims
    d_xu = d_x + d_u
    B, n_g, _ = A_b.shape
    G = graphs_per_step
    assert B % G == 0, "batch must be divisible by graphs_per_step"
    steps = B // G
    N = G * n_g
    *_, k_rows = _w_offsets(d_x, d_u, d_z, d_h)
    assert W_slab.shape == (k_rows, d_h) and V_slab.shape == (V_ROWS, d_h)

    # --- glue packing (plain XLA, traced once) ---
    eye_a = jnp.eye(G, dtype=A_b.dtype)
    A_steps = A_b.reshape(steps, G, n_g, n_g)
    A_bd = jnp.einsum("sgij,gh->sgihj", A_steps, eye_a).reshape(steps, N, N)
    XU_steps = XU.reshape(steps, N, d_xu)
    pool_mat = jnp.einsum("sgi,gh->sghi", poolw.reshape(steps, G, n_g),
                          jnp.eye(G, dtype=poolw.dtype)).reshape(steps, G, N)
    aux = jnp.concatenate([pool_mat, S.reshape(steps, G, d_z)], axis=-1)  # (steps,G,N+d_z)

    kernel = functools.partial(_kernel, dims=dims, n_per_step=N)
    out = pl.pallas_call(
        kernel,
        out_shape=jax.ShapeDtypeStruct((B, d_h), jnp.float32),
        grid_spec=pltpu.PrefetchScalarGridSpec(
            num_scalar_prefetch=0,
            grid=(steps,),                                          # G graphs per step
            in_specs=[
                pl.BlockSpec((1, N, N), lambda t: (t, 0, 0)),       # block-diag adjacency
                pl.BlockSpec((1, N, d_xu), lambda t: (t, 0, 0)),    # [X|U] node features
                pl.BlockSpec((1, G, N + d_z), lambda t: (t, 0, 0)), # [pool matrix | S]
                pl.BlockSpec((k_rows, d_h), lambda t: (0, 0)),      # weight slab (resident)
                pl.BlockSpec((V_ROWS, d_h), lambda t: (0, 0)),      # vector slab (resident)
            ],
            out_specs=pl.BlockSpec((G, d_h), lambda t: (t, 0)),     # lane-dense (G, d_h) rows
        ),
        compiler_params=pltpu.CompilerParams(
            dimension_semantics=("parallel",),   # steps kept even (>=2) -> 2 TCs on v7x
        ),
    )(A_bd, XU_steps, aux, W_slab, V_slab)
    return out


def pack_param_slabs(params, gin_eps, fwt_samples, dims):
    """Pack all parameters into one bf16 weight slab and one f32 vector slab (2 DMAs)."""
    d_x, d_u, d_z, d_h = dims
    (w1x, b1x, w2x, b2x), (w1u, b1u, w2u, b2u), (wz, bz), (wa1, ba1, wa2, ba2) = params
    gsx, bsx, gsu, bsu = fwt_samples
    wa2_pad = jnp.zeros((d_h, d_h), jnp.float32).at[:, :3].set(wa2)
    ba2_pad = jnp.full((d_h,), NEG_BIG, jnp.float32).at[:3].set(ba2)
    W_slab = jnp.concatenate([w1x, w1u, w2x, w2u, wa1, wa2_pad, wz],
                             axis=0).astype(jnp.bfloat16)
    V_slab = jnp.stack([
        jnp.full((d_h,), 1.0 + gin_eps, jnp.float32),   # (1 + GIN eps), plumbed from glue
        b1x, b2x, gsx, bsx,
        b1u, b2u, gsu, bsu,
        bz, ba1, ba2_pad,
    ], axis=0)
    return W_slab, V_slab


if __name__ == "__main__":
    # Small, forward-consistent shapes; G*n_g = 128 (v5e-friendly tile; use 256 on v6e/v7x).
    n_g = 8                     # nodes per graph
    B = 32                      # graphs
    G = 16                      # graphs per grid step  -> grid = (2,), even for v7x's 2 TCs
    d_x = d_u = d_z = 8
    d_h = 128
    dims = (d_x, d_u, d_z, d_h)

    key = jax.random.PRNGKey(0)
    ks = jax.random.split(key, 16)

    # Graph structure: bidirectional ring inside each graph (edge_index -> dense A in glue).
    i = jnp.arange(n_g)
    j = (i + 1) % n_g
    A1 = jnp.zeros((n_g, n_g), jnp.float32).at[j, i].set(1.0).at[i, j].set(1.0)
    A_b = jnp.broadcast_to(A1, (B, n_g, n_g)).astype(jnp.bfloat16)   # 0/1 exact in bf16

    X = jax.random.normal(ks[0], (B, n_g, d_x), jnp.float32)
    U = jax.random.normal(ks[1], (B, n_g, d_u), jnp.float32)
    XU = jnp.concatenate([X, U], axis=-1).astype(jnp.bfloat16)
    S = jax.random.normal(ks[2], (B, d_z), jnp.float32)
    poolw = jnp.full((B, n_g), 1.0 / n_g, jnp.float32)               # all nodes valid

    def _linear(k, fin, fout):
        kw, kb = jax.random.split(k)
        return (jax.random.normal(kw, (fin, fout), jnp.float32) * 0.1,
                jax.random.normal(kb, (fout,), jnp.float32) * 0.1)

    w1x, b1x = _linear(ks[3], d_x, d_h)
    w2x, b2x = _linear(ks[4], d_h, d_h)
    w1u, b1u = _linear(ks[5], d_u, d_h)
    w2u, b2u = _linear(ks[6], d_h, d_h)
    wz, bz = _linear(ks[7], d_z, d_h)
    wa1, ba1 = _linear(ks[8], 3 * d_h, d_h)
    wa2, ba2 = _linear(ks[9], d_h, 3)

    # FeatureWiseTransformationLayer: one Normal rsample per forward, drawn in glue.
    fwt_std = jnp.log(2.0)      # softplus(0); FWT gamma/beta parameters initialize to zero
    gsx = 1.0 + fwt_std * jax.random.normal(ks[10], (d_h,), jnp.float32)
    bsx = 0.0 + fwt_std * jax.random.normal(ks[11], (d_h,), jnp.float32)
    gsu = 1.0 + fwt_std * jax.random.normal(ks[12], (d_h,), jnp.float32)
    bsu = 0.0 + fwt_std * jax.random.normal(ks[13], (d_h,), jnp.float32)

    gin_eps = 0.0               # GINConv(train_eps=True) init; a trained eps plugs in here
    W_slab, V_slab = pack_param_slabs(
        ((w1x, b1x, w2x, b2x), (w1u, b1u, w2u, b2u), (wz, bz), (wa1, ba1, wa2, ba2)),
        gin_eps, (gsx, bsx, gsu, bsu), dims)

    out = prototypical_forward(A_b, XU, poolw, S, W_slab, V_slab, dims,
                               graphs_per_step=G)
    jax.block_until_ready(out)
    assert out.shape == (B, d_h) and out.dtype == jnp.float32
    assert bool(jnp.all(jnp.isfinite(out)))
    print("KERNEL_OK")
</pallas_src>

<mosaic_0001>
module attributes {stable_mosaic.version = 11 : i64} {
  func.func @_kernel(%arg0: i32, %arg1: memref<1x128x128xbf16, #tpu.memory_space<vmem>>, %arg2: memref<1x128x16xbf16, #tpu.memory_space<vmem>>, %arg3: memref<1x16x136xf32, #tpu.memory_space<vmem>>, %arg4: memref<792x128xbf16, #tpu.memory_space<vmem>>, %arg5: memref<12x128xf32, #tpu.memory_space<vmem>>, %arg6: memref<16x128xf32, #tpu.memory_space<vmem>>) attributes {dimension_semantics = [#tpu.dimension_semantics<parallel>], iteration_bounds = array<i64: 2>, scalar_prefetch = 0 : i64, scratch_operands = 0 : i64, tpu.core_type = #tpu.core_type<tc>, window_params = [{transform_indices = @transform_0, window_bounds = array<i64: 1, 128, 128>}, {transform_indices = @transform_1, window_bounds = array<i64: 1, 128, 16>}, {transform_indices = @transform_2, window_bounds = array<i64: 1, 16, 136>}, {pipeline_mode = #tpu.pipeline_mode<synchronous>, transform_indices = @transform_3, window_bounds = array<i64: 792, 128>}, {pipeline_mode = #tpu.pipeline_mode<synchronous>, transform_indices = @transform_4, window_bounds = array<i64: 12, 128>}, {transform_indices = @transform_5, window_bounds = array<i64: 16, 128>}]} {
    %c0 = arith.constant 0 : index
    %c0_0 = arith.constant 0 : index
    %c0_1 = arith.constant 0 : index
    %0 = vector.load %arg1[%c0, %c0_0, %c0_1] : memref<1x128x128xbf16, #tpu.memory_space<vmem>>, vector<1x128x128xbf16>
    %1 = vector.shape_cast %0 : vector<1x128x128xbf16> to vector<128x128xbf16>
    %c0_2 = arith.constant 0 : index
    %c0_3 = arith.constant 0 : index
    %c0_4 = arith.constant 0 : index
    %2 = vector.load %arg2[%c0_2, %c0_3, %c0_4] : memref<1x128x16xbf16, #tpu.memory_space<vmem>>, vector<1x128x16xbf16>
    %3 = vector.shape_cast %2 : vector<1x128x16xbf16> to vector<128x16xbf16>
    %c0_5 = arith.constant 0 : index
    %c0_6 = arith.constant 0 : index
    %c0_7 = arith.constant 0 : index
    %4 = vector.load %arg3[%c0_5, %c0_6, %c0_7] : memref<1x16x136xf32, #tpu.memory_space<vmem>>, vector<1x16x136xf32>
    %5 = vector.shape_cast %4 : vector<1x16x136xf32> to vector<16x136xf32>
    %6 = vector.extract_strided_slice %5 {offsets = [0, 0], sizes = [16, 128], strides = [1, 1]} : vector<16x136xf32> to vector<16x128xf32>
    %7 = arith.truncf %6 : vector<16x128xf32> to vector<16x128xbf16>
    %8 = vector.extract_strided_slice %5 {offsets = [0, 128], sizes = [16, 8], strides = [1, 1]} : vector<16x136xf32> to vector<16x8xf32>
    %9 = arith.truncf %8 : vector<16x8xf32> to vector<16x8xbf16>
    %cst = arith.constant dense<0.000000e+00> : vector<128x16xf32>
    %10 = tpu.matmul %1, %3, %cst {dimension_numbers = #tpu.dot_dimension_numbers<[1], [0], [0], [1], [0, 0, 1, 1], [], []>} : vector<128x128xbf16>, vector<128x16xbf16>, vector<128x16xf32> -> vector<128x16xf32>
    %11 = arith.extf %3 : vector<128x16xbf16> to vector<128x16xf32>
    %c0_8 = arith.constant 0 : index
    %c0_9 = arith.constant 0 : index
    %12 = vector.load %arg5[%c0_8, %c0_9] : memref<12x128xf32, #tpu.memory_space<vmem>>, vector<1x16xf32>
    %13 = vector.broadcast %12 : vector<1x16xf32> to vector<128x16xf32>
    %14 = arith.mulf %11, %13 : vector<128x16xf32>
    %15 = arith.addf %10, %14 : vector<128x16xf32>
    %16 = arith.truncf %15 : vector<128x16xf32> to vector<128x16xbf16>
    %17 = vector.extract_strided_slice %16 {offsets = [0, 0], sizes = [128, 8], strides = [1, 1]} : vector<128x16xbf16> to vector<128x8xbf16>
    %c0_10 = arith.constant 0 : index
    %c0_11 = arith.constant 0 : index
    %18 = vector.load %arg4[%c0_10, %c0_11] : memref<792x128xbf16, #tpu.memory_space<vmem>>, vector<8x128xbf16>
    %c16 = arith.constant 16 : index
    %c0_12 = arith.constant 0 : index
    %19 = vector.load %arg4[%c16, %c0_12] : memref<792x128xbf16, #tpu.memory_space<vmem>>, vector<128x128xbf16>
    %cst_13 = arith.constant dense<0.000000e+00> : vector<128x128xf32>
    %20 = tpu.matmul %17, %18, %cst_13 {dimension_numbers = #tpu.dot_dimension_numbers<[1], [0], [0], [1], [0, 0, 1, 1], [], []>} : vector<128x8xbf16>, vector<8x128xbf16>, vector<128x128xf32> -> vector<128x128xf32>
    %c1 = arith.constant 1 : index
    %c0_14 = arith.constant 0 : index
    %21 = vector.load %arg5[%c1, %c0_14] : memref<12x128xf32, #tpu.memory_space<vmem>>, vector<1x128xf32>
    %22 = vector.broadcast %21 : vector<1x128xf32> to vector<128x128xf32>
    %23 = arith.addf %20, %22 : vector<128x128xf32>
    %cst_15 = arith.constant 0.000000e+00 : f32
    %24 = vector.broadcast %cst_15 : f32 to vector<128x128xf32>
    %25 = arith.maximumf %23, %24 : vector<128x128xf32>
    %26 = arith.truncf %25 : vector<128x128xf32> to vector<128x128xbf16>
    %cst_16 = arith.constant dense<0.000000e+00> : vector<128x128xf32>
    %27 = tpu.matmul %26, %19, %cst_16 {dimension_numbers = #tpu.dot_dimension_numbers<[1], [0], [0], [1], [0, 0, 1, 1], [], []>} : vector<128x128xbf16>, vector<128x128xbf16>, vector<128x128xf32> -> vector<128x128xf32>
    %c2 = arith.constant 2 : index
    %c0_17 = arith.constant 0 : index
    %28 = vector.load %arg5[%c2, %c0_17] : memref<12x128xf32, #tpu.memory_space<vmem>>, vector<1x128xf32>
    %29 = vector.broadcast %28 : vector<1x128xf32> to vector<128x128xf32>
    %30 = arith.addf %27, %29 : vector<128x128xf32>
    %c3 = arith.constant 3 : index
    %c0_18 = arith.constant 0 : index
    %31 = vector.load %arg5[%c3, %c0_18] : memref<12x128xf32, #tpu.memory_space<vmem>>, vector<1x128xf32>
    %32 = vector.broadcast %31 : vector<1x128xf32> to vector<128x128xf32>
    %33 = arith.mulf %32, %30 : vector<128x128xf32>
    %c4 = arith.constant 4 : index
    %c0_19 = arith.constant 0 : index
    %34 = vector.load %arg5[%c4, %c0_19] : memref<12x128xf32, #tpu.memory_space<vmem>>, vector<1x128xf32>
    %35 = vector.broadcast %34 : vector<1x128xf32> to vector<128x128xf32>
    %36 = arith.addf %33, %35 : vector<128x128xf32>
    %37 = arith.negf %36 : vector<128x128xf32>
    %38 = math.exp %37 : vector<128x128xf32>
    %cst_20 = arith.constant 1.000000e+00 : f32
    %39 = vector.broadcast %cst_20 : f32 to vector<128x128xf32>
    %40 = arith.addf %39, %38 : vector<128x128xf32>
    %41 = arith.divf %39, %40 : vector<128x128xf32>
    %42 = arith.mulf %36, %41 : vector<128x128xf32>
    %43 = arith.truncf %42 : vector<128x128xf32> to vector<128x128xbf16>
    %cst_21 = arith.constant dense<0.000000e+00> : vector<16x128xf32>
    %44 = tpu.matmul %7, %43, %cst_21 {dimension_numbers = #tpu.dot_dimension_numbers<[1], [0], [0], [1], [0, 0, 1, 1], [], []>} : vector<16x128xbf16>, vector<128x128xbf16>, vector<16x128xf32> -> vector<16x128xf32>
    %45 = vector.extract_strided_slice %16 {offsets = [0, 8], sizes = [128, 8], strides = [1, 1]} : vector<128x16xbf16> to vector<128x8xbf16>
    %c8 = arith.constant 8 : index
    %c0_22 = arith.constant 0 : index
    %46 = vector.load %arg4[%c8, %c0_22] : memref<792x128xbf16, #tpu.memory_space<vmem>>, vector<8x128xbf16>
    %c144 = arith.constant 144 : index
    %c0_23 = arith.constant 0 : index
    %47 = vector.load %arg4[%c144, %c0_23] : memref<792x128xbf16, #tpu.memory_space<vmem>>, vector<128x128xbf16>
    %cst_24 = arith.constant dense<0.000000e+00> : vector<128x128xf32>
    %48 = tpu.matmul %45, %46, %cst_24 {dimension_numbers = #tpu.dot_dimension_numbers<[1], [0], [0], [1], [0, 0, 1, 1], [], []>} : vector<128x8xbf16>, vector<8x128xbf16>, vector<128x128xf32> -> vector<128x128xf32>
    %c5 = arith.constant 5 : index
    %c0_25 = arith.constant 0 : index
    %49 = vector.load %arg5[%c5, %c0_25] : memref<12x128xf32, #tpu.memory_space<vmem>>, vector<1x128xf32>
    %50 = vector.broadcast %49 : vector<1x128xf32> to vector<128x128xf32>
    %51 = arith.addf %48, %50 : vector<128x128xf32>
    %cst_26 = arith.constant 0.000000e+00 : f32
    %52 = vector.broadcast %cst_26 : f32 to vector<128x128xf32>
    %53 = arith.maximumf %51, %52 : vector<128x128xf32>
    %54 = arith.truncf %53 : vector<128x128xf32> to vector<128x128xbf16>
    %cst_27 = arith.constant dense<0.000000e+00> : vector<128x128xf32>
    %55 = tpu.matmul %54, %47, %cst_27 {dimension_numbers = #tpu.dot_dimension_numbers<[1], [0], [0], [1], [0, 0, 1, 1], [], []>} : vector<128x128xbf16>, vector<128x128xbf16>, vector<128x128xf32> -> vector<128x128xf32>
    %c6 = arith.constant 6 : index
    %c0_28 = arith.constant 0 : index
    %56 = vector.load %arg5[%c6, %c0_28] : memref<12x128xf32, #tpu.memory_space<vmem>>, vector<1x128xf32>
    %57 = vector.broadcast %56 : vector<1x128xf32> to vector<128x128xf32>
    %58 = arith.addf %55, %57 : vector<128x128xf32>
    %c7 = arith.constant 7 : index
    %c0_29 = arith.constant 0 : index
    %59 = vector.load %arg5[%c7, %c0_29] : memref<12x128xf32, #tpu.memory_space<vmem>>, vector<1x128xf32>
    %60 = vector.broadcast %59 : vector<1x128xf32> to vector<128x128xf32>
    %61 = arith.mulf %60, %58 : vector<128x128xf32>
    %c8_30 = arith.constant 8 : index
    %c0_31 = arith.constant 0 : index
    %62 = vector.load %arg5[%c8_30, %c0_31] : memref<12x128xf32, #tpu.memory_space<vmem>>, vector<1x128xf32>
    %63 = vector.broadcast %62 : vector<1x128xf32> to vector<128x128xf32>
    %64 = arith.addf %61, %63 : vector<128x128xf32>
    %65 = arith.negf %64 : vector<128x128xf32>
    %66 = math.exp %65 : vector<128x128xf32>
    %cst_32 = arith.constant 1.000000e+00 : f32
    %67 = vector.broadcast %cst_32 : f32 to vector<128x128xf32>
    %68 = arith.addf %67, %66 : vector<128x128xf32>
    %69 = arith.divf %67, %68 : vector<128x128xf32>
    %70 = arith.mulf %64, %69 : vector<128x128xf32>
    %71 = arith.truncf %70 : vector<128x128xf32> to vector<128x128xbf16>
    %cst_33 = arith.constant dense<0.000000e+00> : vector<16x128xf32>
    %72 = tpu.matmul %7, %71, %cst_33 {dimension_numbers = #tpu.dot_dimension_numbers<[1], [0], [0], [1], [0, 0, 1, 1], [], []>} : vector<16x128xbf16>, vector<128x128xbf16>, vector<16x128xf32> -> vector<16x128xf32>
    %c784 = arith.constant 784 : index
    %c0_34 = arith.constant 0 : index
    %73 = vector.load %arg4[%c784, %c0_34] : memref<792x128xbf16, #tpu.memory_space<vmem>>, vector<8x128xbf16>
    %cst_35 = arith.constant dense<0.000000e+00> : vector<16x128xf32>
    %74 = tpu.matmul %9, %73, %cst_35 {dimension_numbers = #tpu.dot_dimension_numbers<[1], [0], [0], [1], [0, 0, 1, 1], [], []>} : vector<16x8xbf16>, vector<8x128xbf16>, vector<16x128xf32> -> vector<16x128xf32>
    %c9 = arith.constant 9 : index
    %c0_36 = arith.constant 0 : index
    %75 = vector.load %arg5[%c9, %c0_36] : memref<12x128xf32, #tpu.memory_space<vmem>>, vector<1x128xf32>
    %76 = vector.broadcast %75 : vector<1x128xf32> to vector<16x128xf32>
    %77 = arith.addf %74, %76 : vector<16x128xf32>
    %78 = arith.truncf %44 : vector<16x128xf32> to vector<16x128xbf16>
    %c272 = arith.constant 272 : index
    %c0_37 = arith.constant 0 : index
    %79 = vector.load %arg4[%c272, %c0_37] : memref<792x128xbf16, #tpu.memory_space<vmem>>, vector<128x128xbf16>
    %cst_38 = arith.constant dense<0.000000e+00> : vector<16x128xf32>
    %80 = tpu.matmul %78, %79, %cst_38 {dimension_numbers = #tpu.dot_dimension_numbers<[1], [0], [0], [1], [0, 0, 1, 1], [], []>} : vector<16x128xbf16>, vector<128x128xbf16>, vector<16x128xf32> -> vector<16x128xf32>
    %81 = arith.truncf %72 : vector<16x128xf32> to vector<16x128xbf16>
    %c400 = arith.constant 400 : index
    %c0_39 = arith.constant 0 : index
    %82 = vector.load %arg4[%c400, %c0_39] : memref<792x128xbf16, #tpu.memory_space<vmem>>, vector<128x128xbf16>
    %cst_40 = arith.constant dense<0.000000e+00> : vector<16x128xf32>
    %83 = tpu.matmul %81, %82, %cst_40 {dimension_numbers = #tpu.dot_dimension_numbers<[1], [0], [0], [1], [0, 0, 1, 1], [], []>} : vector<16x128xbf16>, vector<128x128xbf16>, vector<16x128xf32> -> vector<16x128xf32>
    %84 = arith.addf %80, %83 : vector<16x128xf32>
    %85 = arith.truncf %77 : vector<16x128xf32> to vector<16x128xbf16>
    %c528 = arith.constant 528 : index
    %c0_41 = arith.constant 0 : index
    %86 = vector.load %arg4[%c528, %c0_41] : memref<792x128xbf16, #tpu.memory_space<vmem>>, vector<128x128xbf16>
    %cst_42 = arith.constant dense<0.000000e+00> : vector<16x128xf32>
    %87 = tpu.matmul %85, %86, %cst_42 {dimension_numbers = #tpu.dot_dimension_numbers<[1], [0], [0], [1], [0, 0, 1, 1], [], []>} : vector<16x128xbf16>, vector<128x128xbf16>, vector<16x128xf32> -> vector<16x128xf32>
    %88 = arith.addf %84, %87 : vector<16x128xf32>
    %c10 = arith.constant 10 : index
    %c0_43 = arith.constant 0 : index
    %89 = vector.load %arg5[%c10, %c0_43] : memref<12x128xf32, #tpu.memory_space<vmem>>, vector<1x128xf32>
    %90 = vector.broadcast %89 : vector<1x128xf32> to vector<16x128xf32>
    %91 = arith.addf %88, %90 : vector<16x128xf32>
    %cst_44 = arith.constant 0.000000e+00 : f32
    %92 = vector.broadcast %cst_44 : f32 to vector<16x128xf32>
    %93 = arith.maximumf %91, %92 : vector<16x128xf32>
    %94 = arith.truncf %93 : vector<16x128xf32> to vector<16x128xbf16>
    %c656 = arith.constant 656 : index
    %c0_45 = arith.constant 0 : index
    %95 = vector.load %arg4[%c656, %c0_45] : memref<792x128xbf16, #tpu.memory_space<vmem>>, vector<128x128xbf16>
    %cst_46 = arith.constant dense<0.000000e+00> : vector<16x128xf32>
    %96 = tpu.matmul %94, %95, %cst_46 {dimension_numbers = #tpu.dot_dimension_numbers<[1], [0], [0], [1], [0, 0, 1, 1], [], []>} : vector<16x128xbf16>, vector<128x128xbf16>, vector<16x128xf32> -> vector<16x128xf32>
    %c11 = arith.constant 11 : index
    %c0_47 = arith.constant 0 : index
    %97 = vector.load %arg5[%c11, %c0_47] : memref<12x128xf32, #tpu.memory_space<vmem>>, vector<1x128xf32>
    %98 = vector.broadcast %97 : vector<1x128xf32> to vector<16x128xf32>
    %99 = arith.addf %96, %98 : vector<16x128xf32>
    %cst_48 = arith.constant dense<0xFF800000> : vector<16xf32>
    %100 = vector.multi_reduction <maximumf>, %99, %cst_48 [1] : vector<16x128xf32> to vector<16xf32>
    %101 = vector.shape_cast %100 : vector<16xf32> to vector<16x1xf32>
    %102 = vector.broadcast %101 : vector<16x1xf32> to vector<16x128xf32>
    %103 = arith.subf %99, %102 : vector<16x128xf32>
    %104 = math.exp %103 : vector<16x128xf32>
    %cst_49 = arith.constant dense<0.000000e+00> : vector<16xf32>
    %105 = vector.multi_reduction <add>, %104, %cst_49 [1] : vector<16x128xf32> to vector<16xf32>
    %106 = vector.shape_cast %105 : vector<16xf32> to vector<16x1xf32>
    %107 = tpu.reciprocal %106 {approx = true} : vector<16x1xf32> -> vector<16x1xf32>
    %108 = vector.broadcast %107 : vector<16x1xf32> to vector<16x128xf32>
    %109 = arith.mulf %104, %108 : vector<16x128xf32>
    %110 = vector.extract_strided_slice %109 {offsets = [0, 0], sizes = [16, 1], strides = [1, 1]} : vector<16x128xf32> to vector<16x1xf32>
    %111 = vector.broadcast %110 : vector<16x1xf32> to vector<16x128xf32>
    %112 = arith.mulf %111, %44 : vector<16x128xf32>
    %113 = vector.extract_strided_slice %109 {offsets = [0, 1], sizes = [16, 1], strides = [1, 1]} : vector<16x128xf32> to vector<16x1xf32>
    %114 = vector.broadcast %113 : vector<16x1xf32> to vector<16x128xf32>
    %115 = arith.mulf %114, %72 : vector<16x128xf32>
    %116 = arith.addf %112, %115 : vector<16x128xf32>
    %117 = vector.extract_strided_slice %109 {offsets = [0, 2], sizes = [16, 1], strides = [1, 1]} : vector<16x128xf32> to vector<16x1xf32>
    %118 = vector.broadcast %117 : vector<16x1xf32> to vector<16x128xf32>
    %119 = arith.mulf %118, %77 : vector<16x128xf32>
    %120 = arith.addf %116, %119 : vector<16x128xf32>
    %c0_50 = arith.constant 0 : index
    %c0_51 = arith.constant 0 : index
    %121 = vector.load %arg6[%c0_50, %c0_51] : memref<16x128xf32, #tpu.memory_space<vmem>>, vector<16x128xf32>
    tpu.vector_store %arg6[%c0_50, %c0_51], %120 {strides = array<i32>} : memref<16x128xf32, #tpu.memory_space<vmem>>, vector<16x128xf32>,
    return
  }
  func.func @transform_0(%arg0: i32) -> (i32, i32, i32) {
    %c0_i32 = arith.constant 0 : i32
    %c0_i32_0 = arith.constant 0 : i32
    %c0_i32_1 = arith.constant 0 : i32
    return %arg0, %c0_i32, %c0_i32_0 : i32, i32, i32
  }
  func.func @transform_1(%arg0: i32) -> (i32, i32, i32) {
    %c0_i32 = arith.constant 0 : i32
    %c0_i32_0 = arith.constant 0 : i32
    %c0_i32_1 = arith.constant 0 : i32
    return %arg0, %c0_i32, %c0_i32_0 : i32, i32, i32
  }
  func.func @transform_2(%arg0: i32) -> (i32, i32, i32) {
    %c0_i32 = arith.constant 0 : i32
    %c0_i32_0 = arith.constant 0 : i32
    %c0_i32_1 = arith.constant 0 : i32
    return %arg0, %c0_i32, %c0_i32_0 : i32, i32, i32
  }
  func.func @transform_3(%arg0: i32) -> (i32, i32) {
    %c0_i32 = arith.constant 0 : i32
    %c0_i32_0 = arith.constant 0 : i32
    %c0_i32_1 = arith.constant 0 : i32
    return %c0_i32, %c0_i32_0 : i32, i32
  }
  func.func @transform_4(%arg0: i32) -> (i32, i32) {
    %c0_i32 = arith.constant 0 : i32
    %c0_i32_0 = arith.constant 0 : i32
    %c0_i32_1 = arith.constant 0 : i32
    return %c0_i32, %c0_i32_0 : i32, i32
  }
  func.func @transform_5(%arg0: i32) -> (i32, i32) {
    %c0_i32 = arith.constant 0 : i32
    %c0_i32_0 = arith.constant 0 : i32
    return %arg0, %c0_i32 : i32, i32
  }
}

</mosaic_0001>

<llo_original>
// kernel: tpu_custom_call.1
$region0: #{tpu_custom_call.1}
  #allocation0 [shape = 'u32[]', space=smem, size = 0x4, offset = 0x4, fixed_abs, tag = 'smem constant byte address 0x4 - core index']
  #allocation1 [shape = 'u32[144,128]{1,0:T(1,128)}', space=vmem, size = 0x12000, scoped, tag = 'internal scratch']
  %s0 = inlined_call_operand.vmem [shape: bf16[2,128,128], index: 0, kind: input, shape index: {}]
  %s1 = inlined_call_operand.vmem [shape: bf16[2,128,16], index: 1, kind: input, shape index: {}]
  %s2 = inlined_call_operand.hbm [shape: f32[2,16,136], index: 2, kind: input, shape index: {}]
  %s3 = inlined_call_operand.hbm [shape: bf16[792,128], index: 3, kind: input, shape index: {}]
  %s4 = inlined_call_operand.vmem [shape: f32[12,128], index: 4, kind: input, shape index: {}]
  %s5 = inlined_call_operand.hbm [shape: f32[32,128], index: 5, kind: output, shape index: {}]
  %s6 = sld [smem:[#allocation0]]
  $region61: #{tpu_custom_call.1} parent=0
    _
  %s8 = ssub.s32 1, %s6
  %s9 = scalar_select 0, %s8, %s6
  $region1: #{tpu_custom_call.1} parent=0
    #allocation2 [shape = 'u8[32768]{0}', space=vmem, size = 0x8000, scoped, tag = 'input window, operand 2']
    #allocation3 [shape = 's32[2]{0}', space=sflag, size = 0x8, scoped, tag = 'scoped memory for tpu_custom_call.1']
    #allocation4 [shape = 's32[2]{0}', space=sflag, size = 0x8, scoped, tag = 'scoped memory for tpu_custom_call.1']
    #allocation5 [shape = 'u8[202752]{0}', space=vmem, size = 0x31800, scoped, tag = 'input window, operand 3, single buffered']
    #allocation6 [shape = 's32[1]{0}', space=sflag, size = 0x4, scoped, tag = 'scoped memory for tpu_custom_call.1']
    #allocation7 [shape = 'u8[16384]{0}', space=vmem, size = 0x4000, scoped, tag = 'output window, operand 0']
    %10 = vsyncpa [#allocation3], 0
    %s11 = scalar_lea.sflag [#allocation3], 1
    %12 = vsyncpa %s11, 0
    %13 = vsyncpa [#allocation6], 0
    %14 = vsyncpa [#allocation4], 0
    %s15 = scalar_lea.sflag [#allocation4], 1
    %16 = vsyncpa %s15, 0
    loop: start=0, step=1, limit=4
    $region2: #{tpu_custom_call.1} parent=1 // loop_pre_header
      _
    $region3: #{tpu_custom_call.1} parent=1 // loop_header
      %s18 = sphi 0, %s22
      %p19 = scmp.ge.s32.totalorder %s18, 4
      %s28 = sphi 0, %s30
      %s31 = sphi 0, %s28
      %s32 = sphi 0, %s31
      %s48 = sphi 0, %s32
      %s54 = sphi 0, %s56
      %s57 = sphi 0, %s54
      %s58 = sphi 0, %s57
      %s74 = sphi 0, %s58
      %s80 = sphi 0, %s82
      %s83 = sphi 0, %s80
      %s84 = sphi 0, %s83
      %s100 = sphi 0, %s84
      %s104 = sphi 0, %s104
      %s106 = sphi 0, %s104
      %s107 = sphi 0, %s106
      %s121 = sphi 0, %s107
      %s125 = sphi 0, %s125
      %s127 = sphi 0, %s125
      %s128 = sphi 0, %s127
      %s142 = sphi 0, %s128
      %s148 = sphi 0, %s150
      %s151 = sphi 0, %s148
      %s152 = sphi 0, %s151
      %s168 = sphi 0, %s152
    $region4: #{tpu_custom_call.1} parent=1 // loop_header_branch
      %21 = sbr.rel (%p19) target = $region8
    $region5: #{tpu_custom_call.1} parent=1 // loop_body
      %s23 = ssub.s32 %s18, 1
      %s24 = ssub.s32 %s18, 2
      %s25 = sadd.s32 %s18, 1
      %s26 = ssub.s32 %s18, %s25
      %p27 = scmp.eq.s32.totalorder %s26, 0
      %s29 = sadd.s32 %s28, 1
      %s30 = scalar_select %p27, %s28, %s29
      %p33 = pneg %p27
      %p34 = scmp.eq.s32.totalorder %s18, 1
      %p35 = por %p33, %p34
      %p36 = scmp.ne.s32.totalorder %s28, %s31
      %p37 = scmp.eq.s32.totalorder %s18, 0
      %p38 = por %p36, %p37
      %p39 = scmp.ne.s32.totalorder %s28, %s31
      %p40 = scmp.eq.s32.totalorder %s23, 1
      %p41 = por %p39, %p40
      %p42 = scmp.ne.s32.totalorder %s31, %s32
      %p43 = scmp.eq.s32.totalorder %s23, 0
      %p44 = por %p42, %p43
      %p45 = scmp.ne.s32.totalorder %s31, %s32
      %p46 = scmp.eq.s32.totalorder %s24, 1
      %p47 = por %p45, %p46
      %p49 = scmp.ne.s32.totalorder %s32, %s48
      %p50 = scmp.eq.s32.totalorder %s24, 0
      %p51 = por %p49, %p50
      %s52 = ssub.s32 %s18, %s25
      %p53 = scmp.eq.s32.totalorder %s52, 0
      %s55 = sadd.s32 %s54, 1
      %s56 = scalar_select %p53, %s54, %s55
      %p59 = pneg %p53
      %p60 = scmp.eq.s32.totalorder %s18, 1
      %p61 = por %p59, %p60
      %p62 = scmp.ne.s32.totalorder %s54, %s57
      %p63 = scmp.eq.s32.totalorder %s18, 0
      %p64 = por %p62, %p63
      %p65 = scmp.ne.s32.totalorder %s54, %s57
      %p66 = scmp.eq.s32.totalorder %s23, 1
      %p67 = por %p65, %p66
      %p68 = scmp.ne.s32.totalorder %s57, %s58
      %p69 = scmp.eq.s32.totalorder %s23, 0
      %p70 = por %p68, %p69
      %p71 = scmp.ne.s32.totalorder %s57, %s58
      %p72 = scmp.eq.s32.totalorder %s24, 1
      %p73 = por %p71, %p72
      %p75 = scmp.ne.s32.totalorder %s58, %s74
      %p76 = scmp.eq.s32.totalorder %s24, 0
      %p77 = por %p75, %p76
      %s78 = ssub.s32 %s18, %s25
      %p79 = scmp.eq.s32.totalorder %s78, 0
      %s81 = sadd.s32 %s80, 1
      %s82 = scalar_select %p79, %s80, %s81
      %p85 = pneg %p79
      %p86 = scmp.eq.s32.totalorder %s18, 1
      %p87 = por %p85, %p86
      %p88 = scmp.ne.s32.totalorder %s80, %s83
      %p89 = scmp.eq.s32.totalorder %s18, 0
      %p90 = por %p88, %p89
      %p91 = scmp.ne.s32.totalorder %s80, %s83
      %p92 = scmp.eq.s32.totalorder %s23, 1
      %p93 = por %p91, %p92
      %p94 = scmp.ne.s32.totalorder %s83, %s84
      %p95 = scmp.eq.s32.totalorder %s23, 0
      %p96 = por %p94, %p95
      %p97 = scmp.ne.s32.totalorder %s83, %s84
      %p98 = scmp.eq.s32.totalorder %s24, 1
      %p99 = por %p97, %p98
      %p101 = scmp.ne.s32.totalorder %s84, %s100
      %p102 = scmp.eq.s32.totalorder %s24, 0
      %p103 = por %p101, %p102
      %s105 = sadd.s32 %s104, 1
      %p108 = scmp.eq.s32.totalorder %s18, 1
      %p109 = scmp.ne.s32.totalorder %s104, %s106
      %p110 = scmp.eq.s32.totalorder %s18, 0
      %p111 = por %p109, %p110
      %p112 = scmp.ne.s32.totalorder %s104, %s106
      %p113 = scmp.eq.s32.totalorder %s23, 1
      %p114 = por %p112, %p113
      %p115 = scmp.ne.s32.totalorder %s106, %s107
      %p116 = scmp.eq.s32.totalorder %s23, 0
      %p117 = por %p115, %p116
      %p118 = scmp.ne.s32.totalorder %s106, %s107
      %p119 = scmp.eq.s32.totalorder %s24, 1
      %p120 = por %p118, %p119
      %p122 = scmp.ne.s32.totalorder %s107, %s121
      %p123 = scmp.eq.s32.totalorder %s24, 0
      %p124 = por %p122, %p123
      %s126 = sadd.s32 %s125, 1
      %p129 = scmp.eq.s32.totalorder %s18, 1
      %p130 = scmp.ne.s32.totalorder %s125, %s127
      %p131 = scmp.eq.s32.totalorder %s18, 0
      %p132 = por %p130, %p131
      %p133 = scmp.ne.s32.totalorder %s125, %s127
      %p134 = scmp.eq.s32.totalorder %s23, 1
      %p135 = por %p133, %p134
      %p136 = scmp.ne.s32.totalorder %s127, %s128
      %p137 = scmp.eq.s32.totalorder %s23, 0
      %p138 = por %p136, %p137
      %p139 = scmp.ne.s32.totalorder %s127, %s128
      %p140 = scmp.eq.s32.totalorder %s24, 1
      %p141 = por %p139, %p140
      %p143 = scmp.ne.s32.totalorder %s128, %s142
      %p144 = scmp.eq.s32.totalorder %s24, 0
      %p145 = por %p143, %p144
      %s146 = ssub.s32 %s18, %s25
      %p147 = scmp.eq.s32.totalorder %s146, 0
      %s149 = sadd.s32 %s148, 1
      %s150 = scalar_select %p147, %s148, %s149
      %p153 = pneg %p147
      %p154 = scmp.eq.s32.totalorder %s18, 1
      %p155 = por %p153, %p154
      %p156 = scmp.ne.s32.totalorder %s148, %s151
      %p157 = scmp.eq.s32.totalorder %s18, 0
      %p158 = por %p156, %p157
      %p159 = scmp.ne.s32.totalorder %s148, %s151
      %p160 = scmp.eq.s32.totalorder %s23, 1
      %p161 = por %p159, %p160
      %p162 = scmp.ne.s32.totalorder %s151, %s152
      %p163 = scmp.eq.s32.totalorder %s23, 0
      %p164 = por %p162, %p163
      %p165 = scmp.ne.s32.totalorder %s151, %s152
      %p166 = scmp.eq.s32.totalorder %s24, 1
      %p167 = por %p165, %p166
      %p169 = scmp.ne.s32.totalorder %s152, %s168
      %p170 = scmp.eq.s32.totalorder %s24, 0
      %p171 = por %p169, %p170
      %p172 = scmp.le.s32.totalorder 1, %s18
      %p173 = scmp.lt.s32.totalorder %s18, 3
      %p174 = pnand %p172, %p173
      %p175 = pneg %p174
      // Predicated region
      $region9: #{tpu_custom_call.1} parent=5 // pred_check
        _
      $region10: #{tpu_custom_call.1} parent=5 // pred_check_branch
        %177 = sbr.rel (%p174) target = $region12
      $region11: #{tpu_custom_call.1} parent=5 // pred_region
        %s178 = ssub.s32 %s18, 1
        // Predicated region
        $region13: #{tpu_custom_call.1} parent=11 // pred_check
          %p179 = pneg %p117
        $region14: #{tpu_custom_call.1} parent=11 // pred_check_branch
          %181 = sbr.rel (%p179) target = $region16
        $region15: #{tpu_custom_call.1} parent=11 // pred_region
          %s183 = ssub.s32 6336, 6336
          %184 = vsyncadd [#allocation6], %s183
          %s185 = sshll.u32 [#allocation5], 4
          %s186 = int_to_ptr.vmem [resolvable:$true] %s185
          %191 = dma.hbm_to_vmem [thread:$0]  %s3, 6336, %s186, [#allocation6], 64, 64, 4
        $region16: #{tpu_custom_call.1} parent=11 // pred_fallthru
          _
        // Predicated region
        $region17: #{tpu_custom_call.1} parent=11 // pred_check
          %p192 = pneg %p138
        $region18: #{tpu_custom_call.1} parent=11 // pred_check_branch
          %194 = sbr.rel (%p192) target = $region20
        $region19: #{tpu_custom_call.1} parent=11 // pred_region
          _
        $region20: #{tpu_custom_call.1} parent=11 // pred_fallthru
          _
      $region12: #{tpu_custom_call.1} parent=5 // pred_fallthru
        _
      %p195 = scmp.lt.s32.totalorder %s18, 2
      // Predicated region
      $region21: #{tpu_custom_call.1} parent=5 // pred_check
        %p196 = pneg %p195
      $region22: #{tpu_custom_call.1} parent=5 // pred_check_branch
        %198 = sbr.rel (%p196) target = $region24
      $region23: #{tpu_custom_call.1} parent=5 // pred_region
        // Predicated region
        $region25: #{tpu_custom_call.1} parent=23 // pred_check
          %p199 = pneg %p38
        $region26: #{tpu_custom_call.1} parent=23 // pred_check_branch
          %201 = sbr.rel (%p199) target = $region28
        $region27: #{tpu_custom_call.1} parent=23 // pred_region
          %p202 = scmp.lt.s32.totalorder %s18, 1
          %s203 = scalar_select %p202, %s18, 1
          %s204 = smul.addr %s203, 16
          %s205 = smul.addr %s204, 4
          %s206 = scalar_lea.vmem %s0, %s205
        $region28: #{tpu_custom_call.1} parent=23 // pred_fallthru
          _
        // Predicated region
        $region29: #{tpu_custom_call.1} parent=23 // pred_check
          %p207 = pneg %p64
        $region30: #{tpu_custom_call.1} parent=23 // pred_check_branch
          %209 = sbr.rel (%p207) target = $region32
        $region31: #{tpu_custom_call.1} parent=23 // pred_region
          %p210 = scmp.lt.s32.totalorder %s18, 1
          %s211 = scalar_select %p210, %s18, 1
          %s212 = smul.addr %s211, 16
          %s213 = smul.addr %s212, 4
          %s214 = scalar_lea.vmem %s1, %s213
        $region32: #{tpu_custom_call.1} parent=23 // pred_fallthru
          _
        // Predicated region
        $region33: #{tpu_custom_call.1} parent=23 // pred_check
          %p215 = pneg %p90
        $region34: #{tpu_custom_call.1} parent=23 // pred_check_branch
          %217 = sbr.rel (%p215) target = $region36
        $region35: #{tpu_custom_call.1} parent=23 // pred_region
          %s218 = sand.u32 %s80, 1
          %s219 = scalar_lea.sflag [#allocation3], %s218
          %s220 = sand.u32 %s80, 1
          %s221 = smul.addr %s220, 32
          %s222 = scalar_lea.vmem [#allocation2], %s221
          %s224 = ssub.s32 512, 512
          %225 = vsyncadd %s219, %s224
          %s226 = smul.addr %s18, 4
          %s227 = smul.addr %s226, 128
          %s228 = scalar_lea.hbm %s2, %s227
          %s229 = sshll.u32 %s222, 4
          %s230 = int_to_ptr.vmem [resolvable:$true] %s229
          %235 = dma.hbm_to_vmem [thread:$0]  %s228, 512, %s230, %s219, 256, 256, 16
        $region36: #{tpu_custom_call.1} parent=23 // pred_fallthru
          _
      $region24: #{tpu_custom_call.1} parent=5 // pred_fallthru
        _
      %p236 = scmp.le.s32.totalorder 1, %s18
      %p237 = scmp.lt.s32.totalorder %s18, 3
      %p238 = pnand %p236, %p237
      %p239 = pneg %p238
      // Predicated region
      $region37: #{tpu_custom_call.1} parent=5 // pred_check
        _
      $region38: #{tpu_custom_call.1} parent=5 // pred_check_branch
        %241 = sbr.rel (%p238) target = $region40
      $region39: #{tpu_custom_call.1} parent=5 // pred_region
        %s242 = ssub.s32 %s18, 1
        %s243 = sand.u32 %s83, 1
        %s244 = scalar_lea.sflag [#allocation3], %s243
        %s245 = sand.u32 %s83, 1
        %s246 = smul.addr %s245, 32
        %s247 = scalar_lea.vmem [#allocation2], %s246
        // Predicated region
        $region41: #{tpu_custom_call.1} parent=39 // pred_check
          %p248 = pneg %p96
        $region42: #{tpu_custom_call.1} parent=39 // pred_check_branch
          %250 = sbr.rel (%p248) target = $region44
        $region43: #{tpu_custom_call.1} parent=39 // pred_region
          %251 = dma.done %s244, 512
        $region44: #{tpu_custom_call.1} parent=39 // pred_fallthru
          _
        // Predicated region
        $region45: #{tpu_custom_call.1} parent=39 // pred_check
          %p252 = pneg %p117
        $region46: #{tpu_custom_call.1} parent=39 // pred_check_branch
          %254 = sbr.rel (%p252) target = $region48
        $region47: #{tpu_custom_call.1} parent=39 // pred_region
          %255 = dma.done [#allocation6], 6336
        $region48: #{tpu_custom_call.1} parent=39 // pred_fallthru
          _
        %p256 = scmp.lt.s32.totalorder %s23, 1
        %s257 = scalar_select %p256, %s23, 1
        %s258 = smul.addr %s257, 16
        %s259 = smul.addr %s258, 4
        %s260 = scalar_lea.vmem %s0, %s259
        %p261 = pneg %p44
        %p262 = pneg %p41
        %p263 = scmp.lt.s32.totalorder %s23, 1
        %s264 = scalar_select %p263, %s23, 1
        %s265 = smul.addr %s264, 16
        %s266 = smul.addr %s265, 4
        %s267 = scalar_lea.vmem %s1, %s266
        %p268 = pneg %p70
        %p269 = pneg %p67
        %s270 = sand.u32 %s83, 1
        %s271 = scalar_lea.sflag [#allocation3], %s270
        %s272 = sand.u32 %s83, 1
        %s273 = smul.addr %s272, 32
        %s274 = scalar_lea.vmem [#allocation2], %s273
        %p275 = pneg %p96
        %p276 = pneg %p93
        %p277 = pneg %p117
        %p278 = pneg %p114
        %p279 = pneg %p138
        %p280 = pneg %p135
        %p281 = pneg %p164
        %p282 = pneg %p161
        %s283 = sand.u32 %s151, 1
        %s284 = scalar_lea.sflag [#allocation4], %s283
        %s285 = sand.u32 %s151, 1
        %s286 = smul.addr %s285, 16
        %s287 = scalar_lea.vmem [#allocation7], %s286
        %p288 = scmp.lt.s32.totalorder %s23, 1
        %s289 = scalar_select %p288, %s23, 1
        %s290 = smul.addr %s289, 16
        %s291 = smul.addr %s290, 4
        %s292 = scalar_lea.vmem %s0, %s291
        %p293 = scmp.lt.s32.totalorder %s23, 1
        %s294 = scalar_select %p293, %s23, 1
        %s295 = smul.addr %s294, 16
        %s296 = smul.addr %s295, 4
        %s297 = scalar_lea.vmem %s1, %s296
        %s298 = smul.u32 2, %s23
        %v300 = vld [vmem:[%s292] sm:$0xf]
        %v301 = vld [vmem:[%s292 + $0x4] sm:$0xf]
        %v302 = vld [vmem:[%s292 + $0x8] sm:$0xf]
        %v303 = vld [vmem:[%s292 + $0xc] sm:$0xf]
        %v304 = vld [vmem:[%s292 + $0x10] sm:$0xf]
        %v305 = vld [vmem:[%s292 + $0x14] sm:$0xf]
        %v306 = vld [vmem:[%s292 + $0x18] sm:$0xf]
        %v307 = vld [vmem:[%s292 + $0x1c] sm:$0xf]
        %v308 = vld [vmem:[%s292 + $0x20] sm:$0xf]
        %v309 = vld [vmem:[%s292 + $0x24] sm:$0xf]
        %v310 = vld [vmem:[%s292 + $0x28] sm:$0xf]
        %v311 = vld [vmem:[%s292 + $0x2c] sm:$0xf]
        %v312 = vld [vmem:[%s292 + $0x30] sm:$0xf]
        %v313 = vld [vmem:[%s292 + $0x34] sm:$0xf]
        %v314 = vld [vmem:[%s292 + $0x38] sm:$0xf]
        %v315 = vld [vmem:[%s292 + $0x3c] sm:$0xf]
        %v316 = vld [vmem:[%s297] sm:$0xf]
        %v317 = vld [vmem:[%s297 + $0x4] sm:$0xf]
        %v318 = vld [vmem:[%s297 + $0x8] sm:$0xf]
        %v319 = vld [vmem:[%s297 + $0xc] sm:$0xf]
        %v320 = vld [vmem:[%s297 + $0x10] sm:$0xf]
        %v321 = vld [vmem:[%s297 + $0x14] sm:$0xf]
        %v322 = vld [vmem:[%s297 + $0x18] sm:$0xf]
        %v323 = vld [vmem:[%s297 + $0x1c] sm:$0xf]
        %v324 = vld [vmem:[%s297 + $0x20] sm:$0xf]
        %v325 = vld [vmem:[%s297 + $0x24] sm:$0xf]
        %v326 = vld [vmem:[%s297 + $0x28] sm:$0xf]
        %v327 = vld [vmem:[%s297 + $0x2c] sm:$0xf]
        %v328 = vld [vmem:[%s297 + $0x30] sm:$0xf]
        %v329 = vld [vmem:[%s297 + $0x34] sm:$0xf]
        %v330 = vld [vmem:[%s297 + $0x38] sm:$0xf]
        %v331 = vld [vmem:[%s297 + $0x3c] sm:$0xf]
        %v332 = vld [vmem:[%s247] sm:$0xff]
        %v333 = vld [vmem:[%s247 + $0x8] sm:$0xff]
        %v334 = vld [vmem:[%s247 + $0x10] sm:$0xff]
        %v335 = vld [vmem:[%s247 + $0x18] sm:$0xff]
        %v336 = vpack.c.bf16 %v334, %v332
        %v337 = vpack.c.bf16 %v335, %v333
        %v338 = vunpack.c.l.bf16 %v316
        %v339 = vunpack.c.l.bf16 %v317
        %v340 = vunpack.c.l.bf16 %v318
        %v341 = vunpack.c.l.bf16 %v319
        %v342 = vunpack.c.l.bf16 %v320
        %v343 = vunpack.c.l.bf16 %v321
        %v344 = vunpack.c.l.bf16 %v322
        %v345 = vunpack.c.l.bf16 %v323
        %v346 = vunpack.c.l.bf16 %v324
        %v347 = vunpack.c.l.bf16 %v325
        %v348 = vunpack.c.l.bf16 %v326
        %v349 = vunpack.c.l.bf16 %v327
        %v350 = vunpack.c.l.bf16 %v328
        %v351 = vunpack.c.l.bf16 %v329
        %v352 = vunpack.c.l.bf16 %v330
        %v353 = vunpack.c.l.bf16 %v331
        %v354 = vld [vmem:[%s4] sm:$0x1]
        %v355 = vlaneseq
        %v356 = vshrl.u32 %v355, 7
        %v357 = vsub.s32 0, %v356
        %v358 = vrot.slane %v354, %v357
        %v359 = vmul.f32 %v338, %v358
        %v360 = vmul.f32 %v339, %v358
        %v361 = vmul.f32 %v340, %v358
        %v362 = vmul.f32 %v341, %v358
        %v363 = vmul.f32 %v342, %v358
        %v364 = vmul.f32 %v343, %v358
        %v365 = vmul.f32 %v344, %v358
        %v366 = vmul.f32 %v345, %v358
        %v367 = vmul.f32 %v346, %v358
        %v368 = vmul.f32 %v347, %v358
        %v369 = vmul.f32 %v348, %v358
        %v370 = vmul.f32 %v349, %v358
        %v371 = vmul.f32 %v350, %v358
        %v372 = vmul.f32 %v351, %v358
        %v373 = vmul.f32 %v352, %v358
        %v374 = vmul.f32 %v353, %v358
        %v391 = vunpack.c.l.b16 %v300
        %v392 = vunpack.c.l.b16 %v301
        %v393 = vunpack.c.l.b16 %v302
        %v394 = vunpack.c.l.b16 %v303
        %v395 = vunpack.c.l.b16 %v304
        %v396 = vunpack.c.l.b16 %v305
        %v397 = vunpack.c.l.b16 %v306
        %v398 = vunpack.c.l.b16 %v307
        %v399 = vunpack.c.l.b16 %v308
        %v400 = vunpack.c.l.b16 %v309
        %v401 = vunpack.c.l.b16 %v310
        %v402 = vunpack.c.l.b16 %v311
        %v403 = vunpack.c.l.b16 %v312
        %v404 = vunpack.c.l.b16 %v313
        %v405 = vunpack.c.l.b16 %v314
        %v406 = vunpack.c.l.b16 %v315
        %v407 = vpack.c.b16 %v392, %v391
        %v408 = vpack.c.b16 %v394, %v393
        %v409 = vpack.c.b16 %v396, %v395
        %v410 = vpack.c.b16 %v398, %v397
        %v411 = vpack.c.b16 %v400, %v399
        %v412 = vpack.c.b16 %v402, %v401
        %v413 = vpack.c.b16 %v404, %v403
        %v414 = vpack.c.b16 %v406, %v405
        %v439 = vunpack.c.l.b16 %v316
        %v440 = vunpack.c.l.b16 %v317
        %v441 = vunpack.c.l.b16 %v318
        %v442 = vunpack.c.l.b16 %v319
        %v443 = vunpack.c.l.b16 %v320
        %v444 = vunpack.c.l.b16 %v321
        %v445 = vunpack.c.l.b16 %v322
        %v446 = vunpack.c.l.b16 %v323
        %v447 = vunpack.c.l.b16 %v324
        %v448 = vunpack.c.l.b16 %v325
        %v449 = vunpack.c.l.b16 %v326
        %v450 = vunpack.c.l.b16 %v327
        %v451 = vunpack.c.l.b16 %v328
        %v452 = vunpack.c.l.b16 %v329
        %v453 = vunpack.c.l.b16 %v330
        %v454 = vunpack.c.l.b16 %v331
        %v455 = vpack.c.b16 %v440, %v439
        %v456 = vpack.c.b16 %v442, %v441
        %v457 = vpack.c.b16 %v444, %v443
        %v458 = vpack.c.b16 %v446, %v445
        %v459 = vpack.c.b16 %v448, %v447
        %v460 = vpack.c.b16 %v450, %v449
        %v461 = vpack.c.b16 %v452, %v451
        %v462 = vpack.c.b16 %v454, %v453
        %471 = vmatprep.subr.bf16.mxu0 0
        %472 = vmatpush1.bf16.msra.mxu0 %v455
        %473 = vmatprep.subr.bf16.mxu0 0
        %474 = vmatpush1.bf16.msra.mxu0 %v456
        %475 = vmatprep.subr.bf16.mxu0 0
        %476 = vmatpush1.bf16.msra.mxu0 %v457
        %477 = vmatprep.subr.bf16.mxu0 0
        %478 = vmatpush1.bf16.msra.mxu0 %v458
        %479 = vmatprep.subr.bf16.mxu0 0
        %480 = vmatpush1.bf16.msra.mxu0 %v459
        %481 = vmatprep.subr.bf16.mxu0 0
        %482 = vmatpush1.bf16.msra.mxu0 %v460
        %483 = vmatprep.subr.bf16.mxu0 0
        %484 = vmatpush1.bf16.msra.mxu0 %v461
        %485 = vmatprep.subr.bf16.mxu0 0
        %486 = vmatpush1.bf16.msra.mxu0 %v462
        %487 = vmatprep.subr.bf16.mxu0 0
        %488 = vmatpush1.bf16.msra.mxu0 0
        %489 = vmatprep.subr.bf16.mxu0 0
        %490 = vmatpush1.bf16.msra.mxu0 0
        %491 = vmatprep.subr.bf16.mxu0 0
        %492 = vmatpush1.bf16.msra.mxu0 0
        %493 = vmatprep.subr.bf16.mxu0 0
        %494 = vmatpush1.bf16.msra.mxu0 0
        %495 = vmatprep.subr.bf16.mxu0 0
        %496 = vmatpush1.bf16.msra.mxu0 0
        %497 = vmatprep.subr.bf16.mxu0 0
        %498 = vmatpush1.bf16.msra.mxu0 0
        %499 = vmatprep.subr.bf16.mxu0 0
        %500 = vmatpush1.bf16.msra.mxu0 0
        %501 = vmatprep.subr.bf16.mxu0 0
        %502 = vmatpush1.bf16.msra.mxu0 0
        %503 = vmatprep.mubr.bf16.mxu0 0
        %504 = vmatmul.mubr.bf16.gmra.mrb[0].mxu0 %v407
        %v505 = vpop.f32.mrb[0].mxu0
        %v506 = vadd.f32 %v359, %v505
        %v507 = vpop.f32.mrb[0].mxu0
        %v508 = vpop.f32.mrb[0].mxu0
        %v509 = vadd.f32 %v360, %v508
        %v510 = vpop.f32.mrb[0].mxu0
        %511 = vmatprep.mubr.bf16.mxu0 0
        %512 = vmatmul.mubr.bf16.gmra.mrb[0].mxu0 %v408
        %v513 = vpop.f32.mrb[0].mxu0
        %v514 = vadd.f32 %v361, %v513
        %v515 = vpop.f32.mrb[0].mxu0
        %v516 = vpop.f32.mrb[0].mxu0
        %v517 = vadd.f32 %v362, %v516
        %v518 = vpop.f32.mrb[0].mxu0
        %519 = vmatprep.mubr.bf16.mxu0 0
        %520 = vmatmul.mubr.bf16.gmra.mrb[0].mxu0 %v409
        %v521 = vpop.f32.mrb[0].mxu0
        %v522 = vadd.f32 %v363, %v521
        %v523 = vpop.f32.mrb[0].mxu0
        %v524 = vpop.f32.mrb[0].mxu0
        %v525 = vadd.f32 %v364, %v524
        %v526 = vpop.f32.mrb[0].mxu0
        %527 = vmatprep.mubr.bf16.mxu0 0
        %528 = vmatmul.mubr.bf16.gmra.mrb[0].mxu0 %v410
        %v529 = vpop.f32.mrb[0].mxu0
        %v530 = vadd.f32 %v365, %v529
        %v531 = vpop.f32.mrb[0].mxu0
        %v532 = vpop.f32.mrb[0].mxu0
        %v533 = vadd.f32 %v366, %v532
        %v534 = vpop.f32.mrb[0].mxu0
        %535 = vmatprep.mubr.bf16.mxu0 0
        %536 = vmatmul.mubr.bf16.gmra.mrb[0].mxu0 %v411
        %v537 = vpop.f32.mrb[0].mxu0
        %v538 = vadd.f32 %v367, %v537
        %v539 = vpop.f32.mrb[0].mxu0
        %v540 = vpop.f32.mrb[0].mxu0
        %v541 = vadd.f32 %v368, %v540
        %v542 = vpop.f32.mrb[0].mxu0
        %543 = vmatprep.mubr.bf16.mxu0 0
        %544 = vmatmul.mubr.bf16.gmra.mrb[0].mxu0 %v412
        %v545 = vpop.f32.mrb[0].mxu0
        %v546 = vadd.f32 %v369, %v545
        %v547 = vpop.f32.mrb[0].mxu0
        %v548 = vpop.f32.mrb[0].mxu0
        %v549 = vadd.f32 %v370, %v548
        %v550 = vpop.f32.mrb[0].mxu0
        %551 = vmatprep.mubr.bf16.mxu0 0
        %552 = vmatmul.mubr.bf16.gmra.mrb[0].mxu0 %v413
        %v553 = vpop.f32.mrb[0].mxu0
        %v554 = vadd.f32 %v371, %v553
        %v555 = vpop.f32.mrb[0].mxu0
        %v556 = vpop.f32.mrb[0].mxu0
        %v557 = vadd.f32 %v372, %v556
        %v558 = vpop.f32.mrb[0].mxu0
        %559 = vmatprep.mubr.bf16.mxu0 0
        %560 = vmatmul.mubr.bf16.gmra.mrb[0].mxu0 %v414
        %v561 = vpop.f32.mrb[0].mxu0
        %v562 = vadd.f32 %v373, %v561
        %v563 = vpop.f32.mrb[0].mxu0
        %v564 = vpop.f32.mrb[0].mxu0
        %v565 = vadd.f32 %v374, %v564
        %v566 = vpop.f32.mrb[0].mxu0
        %567 = vdwg.mxu0
        %v568 = vpack.c.bf16 %v509, %v506
        %v569 = vpack.c.bf16 %v517, %v514
        %v570 = vpack.c.bf16 %v525, %v522
        %v571 = vpack.c.bf16 %v533, %v530
        %v572 = vpack.c.bf16 %v541, %v538
        %v573 = vpack.c.bf16 %v549, %v546
        %v574 = vpack.c.bf16 %v557, %v554
        %v575 = vpack.c.bf16 %v565, %v562
        %v576 = vld [vmem:[#allocation5] sm:$0xf]
        %v577 = vld [vmem:[#allocation5 + $0x8] sm:$0xf]
        %v578 = vld [vmem:[#allocation5 + $0xc] sm:$0xf]
        %v579 = vld [vmem:[#allocation5 + $0x10] sm:$0xf]
        %v580 = vld [vmem:[#allocation5 + $0x14] sm:$0xf]
        %v581 = vld [vmem:[#allocation5 + $0x18] sm:$0xf]
        %v582 = vld [vmem:[#allocation5 + $0x1c] sm:$0xf]
        %v583 = vld [vmem:[#allocation5 + $0x20] sm:$0xf]
        %v584 = vld [vmem:[#allocation5 + $0x24] sm:$0xf]
        %v585 = vld [vmem:[#allocation5 + $0x28] sm:$0xf]
        %v586 = vld [vmem:[#allocation5 + $0x2c] sm:$0xf]
        %v587 = vld [vmem:[#allocation5 + $0x30] sm:$0xf]
        %v588 = vld [vmem:[#allocation5 + $0x34] sm:$0xf]
        %v589 = vld [vmem:[#allocation5 + $0x38] sm:$0xf]
        %v590 = vld [vmem:[#allocation5 + $0x3c] sm:$0xf]
        %v591 = vld [vmem:[#allocation5 + $0x40] sm:$0xf]
        %v592 = vld [vmem:[#allocation5 + $0x44] sm:$0xf]
        %v593 = vld [vmem:[%s4 + $0x1] sm:$0x1]
        %v594 = vlaneseq
        %v595 = vshrl.u32 %v594, 7
        %v596 = vsub.s32 0, %v595
        %v597 = vrot.slane %v593, %v596
        %vm598 = vcmask 64512
        %v600 = vsel %vm598, %v568, 0
        %v603 = vsel %vm598, %v569, 0
        %v606 = vsel %vm598, %v570, 0
        %v609 = vsel %vm598, %v571, 0
        %v612 = vsel %vm598, %v572, 0
        %v615 = vsel %vm598, %v573, 0
        %v618 = vsel %vm598, %v574, 0
        %v621 = vsel %vm598, %v575, 0
        %vm623 = vcmask 1043456
        %v625 = vsel %vm623, %v576, 0
        %627 = vmatprep.subr.bf16.mxu0 0
        %628 = vmatpush1.bf16.msra.mxu0 %v625
        %629 = vmatprep.subr.bf16.mxu0 0
        %630 = vmatpush1.bf16.msra.mxu0 0
        %631 = vmatprep.subr.bf16.mxu0 0
        %632 = vmatpush1.bf16.msra.mxu0 0
        %633 = vmatprep.subr.bf16.mxu0 0
        %634 = vmatpush1.bf16.msra.mxu0 0
        %635 = vmatprep.subr.bf16.mxu0 0
        %636 = vmatpush1.bf16.msra.mxu0 0
        %637 = vmatprep.subr.bf16.mxu0 0
        %638 = vmatpush1.bf16.msra.mxu0 0
        %639 = vmatprep.subr.bf16.mxu0 0
        %640 = vmatpush1.bf16.msra.mxu0 0
        %641 = vmatprep.subr.bf16.mxu0 0
        %642 = vmatpush1.bf16.msra.mxu0 0
        %643 = vmatprep.subr.bf16.mxu0 0
        %644 = vmatpush1.bf16.msra.mxu0 0
        %645 = vmatprep.subr.bf16.mxu0 0
        %646 = vmatpush1.bf16.msra.mxu0 0
        %647 = vmatprep.subr.bf16.mxu0 0
        %648 = vmatpush1.bf16.msra.mxu0 0
        %649 = vmatprep.subr.bf16.mxu0 0
        %650 = vmatpush1.bf16.msra.mxu0 0
        %651 = vmatprep.subr.bf16.mxu0 0
        %652 = vmatpush1.bf16.msra.mxu0 0
        %653 = vmatprep.subr.bf16.mxu0 0
        %654 = vmatpush1.bf16.msra.mxu0 0
        %655 = vmatprep.subr.bf16.mxu0 0
        %656 = vmatpush1.bf16.msra.mxu0 0
        %657 = vmatprep.subr.bf16.mxu0 0
        %658 = vmatpush1.bf16.msra.mxu0 0
        %659 = vmatprep.mubr.bf16.mxu0 0
        %660 = vmatmul.mubr.bf16.gmra.mrb[0].mxu0 %v600
        %v661 = vpop.f32.mrb[0].mxu0
        %v662 = vadd.f32 %v597, %v661
        %v663 = vpop.f32.mrb[0].mxu0
        %v664 = vpop.f32.mrb[0].mxu0
        %v665 = vadd.f32 %v597, %v664
        %v666 = vpop.f32.mrb[0].mxu0
        %667 = vmatprep.mubr.bf16.mxu0 0
        %668 = vmatmul.mubr.bf16.gmra.mrb[0].mxu0 %v603
        %v669 = vpop.f32.mrb[0].mxu0
        %v670 = vadd.f32 %v597, %v669
        %v671 = vpop.f32.mrb[0].mxu0
        %v672 = vpop.f32.mrb[0].mxu0
        %v673 = vadd.f32 %v597, %v672
        %v674 = vpop.f32.mrb[0].mxu0
        %675 = vmatprep.mubr.bf16.mxu0 0
        %676 = vmatmul.mubr.bf16.gmra.mrb[0].mxu0 %v606
        %v677 = vpop.f32.mrb[0].mxu0
        %v678 = vadd.f32 %v597, %v677
        %v679 = vpop.f32.mrb[0].mxu0
        %v680 = vpop.f32.mrb[0].mxu0
        %v681 = vadd.f32 %v597, %v680
        %v682 = vpop.f32.mrb[0].mxu0
        %683 = vmatprep.mubr.bf16.mxu0 0
        %684 = vmatmul.mubr.bf16.gmra.mrb[0].mxu0 %v609
        %v685 = vpop.f32.mrb[0].mxu0
        %v686 = vadd.f32 %v597, %v685
        %v687 = vpop.f32.mrb[0].mxu0
        %v688 = vpop.f32.mrb[0].mxu0
        %v689 = vadd.f32 %v597, %v688
        %v690 = vpop.f32.mrb[0].mxu0
        %691 = vmatprep.mubr.bf16.mxu0 0
        %692 = vmatmul.mubr.bf16.gmra.mrb[0].mxu0 %v612
        %v693 = vpop.f32.mrb[0].mxu0
        %v694 = vadd.f32 %v597, %v693
        %v695 = vpop.f32.mrb[0].mxu0
        %v696 = vpop.f32.mrb[0].mxu0
        %v697 = vadd.f32 %v597, %v696
        %v698 = vpop.f32.mrb[0].mxu0
        %699 = vmatprep.mubr.bf16.mxu0 0
        %700 = vmatmul.mubr.bf16.gmra.mrb[0].mxu0 %v615
        %v701 = vpop.f32.mrb[0].mxu0
        %v702 = vadd.f32 %v597, %v701
        %v703 = vpop.f32.mrb[0].mxu0
        %v704 = vpop.f32.mrb[0].mxu0
        %v705 = vadd.f32 %v597, %v704
        %v706 = vpop.f32.mrb[0].mxu0
        %707 = vmatprep.mubr.bf16.mxu0 0
        %708 = vmatmul.mubr.bf16.gmra.mrb[0].mxu0 %v618
        %v709 = vpop.f32.mrb[0].mxu0
        %v710 = vadd.f32 %v597, %v709
        %v711 = vpop.f32.mrb[0].mxu0
        %v712 = vpop.f32.mrb[0].mxu0
        %v713 = vadd.f32 %v597, %v712
        %v714 = vpop.f32.mrb[0].mxu0
        %715 = vmatprep.mubr.bf16.mxu0 0
        %716 = vmatmul.mubr.bf16.gmra.mrb[0].mxu0 %v621
        %v717 = vpop.f32.mrb[0].mxu0
        %v718 = vadd.f32 %v597, %v717
        %v719 = vpop.f32.mrb[0].mxu0
        %v720 = vpop.f32.mrb[0].mxu0
        %v721 = vadd.f32 %v597, %v720
        %v722 = vpop.f32.mrb[0].mxu0
        %723 = vdwg.mxu0
        %v724 = vmax.f32 %v662, 0.0
        %v725 = vmax.f32 %v665, 0.0
        %v726 = vmax.f32 %v670, 0.0
        %v727 = vmax.f32 %v673, 0.0
        %v728 = vmax.f32 %v678, 0.0
        %v729 = vmax.f32 %v681, 0.0
        %v730 = vmax.f32 %v686, 0.0
        %v731 = vmax.f32 %v689, 0.0
        %v732 = vmax.f32 %v694, 0.0
        %v733 = vmax.f32 %v697, 0.0
        %v734 = vmax.f32 %v702, 0.0
        %v735 = vmax.f32 %v705, 0.0
        %v736 = vmax.f32 %v710, 0.0
        %v737 = vmax.f32 %v713, 0.0
        %v738 = vmax.f32 %v718, 0.0
        %v739 = vmax.f32 %v721, 0.0
        %v740 = vpack.c.bf16 %v725, %v724
        %v741 = vpack.c.bf16 %v727, %v726
        %v742 = vpack.c.bf16 %v729, %v728
        %v743 = vpack.c.bf16 %v731, %v730
        %v744 = vpack.c.bf16 %v733, %v732
        %v745 = vpack.c.bf16 %v735, %v734
        %v746 = vpack.c.bf16 %v737, %v736
        %v747 = vpack.c.bf16 %v739, %v738
        %v748 = vld [vmem:[%s4 + $0x2] sm:$0x1]
        %v749 = vlaneseq
        %v750 = vshrl.u32 %v749, 7
        %v751 = vsub.s32 0, %v750
        %v752 = vrot.slane %v748, %v751
        %v769 = vunpack.c.l.b16 %v577
        %v770 = vunpack.c.l.b16 %v578
        %v771 = vunpack.c.l.b16 %v579
        %v772 = vunpack.c.l.b16 %v580
        %v773 = vunpack.c.l.b16 %v581
        %v774 = vunpack.c.l.b16 %v582
        %v775 = vunpack.c.l.b16 %v583
        %v776 = vunpack.c.l.b16 %v584
        %v777 = vunpack.c.l.b16 %v585
        %v778 = vunpack.c.l.b16 %v586
        %v779 = vunpack.c.l.b16 %v587
        %v780 = vunpack.c.l.b16 %v588
        %v781 = vunpack.c.l.b16 %v589
        %v782 = vunpack.c.l.b16 %v590
        %v783 = vunpack.c.l.b16 %v591
        %v784 = vunpack.c.l.b16 %v592
        %v785 = vpack.c.b16 %v770, %v769
        %v786 = vpack.c.b16 %v772, %v771
        %v787 = vpack.c.b16 %v774, %v773
        %v788 = vpack.c.b16 %v776, %v775
        %v789 = vpack.c.b16 %v778, %v777
        %v790 = vpack.c.b16 %v780, %v779
        %v791 = vpack.c.b16 %v782, %v781
        %v792 = vpack.c.b16 %v784, %v783
        %801 = vmatprep.subr.bf16.mxu0 0
        %802 = vmatpush1.bf16.msra.mxu0 %v785
        %803 = vmatprep.subr.bf16.mxu0 0
        %804 = vmatpush1.bf16.msra.mxu0 %v786
        %805 = vmatprep.subr.bf16.mxu0 0
        %806 = vmatpush1.bf16.msra.mxu0 %v787
        %807 = vmatprep.subr.bf16.mxu0 0
        %808 = vmatpush1.bf16.msra.mxu0 %v788
        %809 = vmatprep.subr.bf16.mxu0 0
        %810 = vmatpush1.bf16.msra.mxu0 %v789
        %811 = vmatprep.subr.bf16.mxu0 0
        %812 = vmatpush1.bf16.msra.mxu0 %v790
        %813 = vmatprep.subr.bf16.mxu0 0
        %814 = vmatpush1.bf16.msra.mxu0 %v791
        %815 = vmatprep.subr.bf16.mxu0 0
        %816 = vmatpush1.bf16.msra.mxu0 %v792
        %817 = vmatprep.subr.bf16.mxu0 0
        %818 = vmatpush1.bf16.msra.mxu0 0
        %819 = vmatprep.subr.bf16.mxu0 0
        %820 = vmatpush1.bf16.msra.mxu0 0
        %821 = vmatprep.subr.bf16.mxu0 0
        %822 = vmatpush1.bf16.msra.mxu0 0
        %823 = vmatprep.subr.bf16.mxu0 0
        %824 = vmatpush1.bf16.msra.mxu0 0
        %825 = vmatprep.subr.bf16.mxu0 0
        %826 = vmatpush1.bf16.msra.mxu0 0
        %827 = vmatprep.subr.bf16.mxu0 0
        %828 = vmatpush1.bf16.msra.mxu0 0
        %829 = vmatprep.subr.bf16.mxu0 0
        %830 = vmatpush1.bf16.msra.mxu0 0
        %831 = vmatprep.subr.bf16.mxu0 0
        %832 = vmatpush1.bf16.msra.mxu0 0
        %833 = vmatprep.mubr.bf16.mxu0 0
        %834 = vmatmul.mubr.bf16.gmra.mrb[0].mxu0 %v740
        %v835 = vpop.f32.mrb[0].mxu0
        %v836 = vadd.f32 %v752, %v835
        %v837 = vpop.f32.mrb[0].mxu0
        %v838 = vpop.f32.mrb[0].mxu0
        %v839 = vadd.f32 %v752, %v838
        %v840 = vpop.f32.mrb[0].mxu0
        %841 = vmatprep.mubr.bf16.mxu0 0
        %842 = vmatmul.mubr.bf16.gmra.mrb[0].mxu0 %v741
        %v843 = vpop.f32.mrb[0].mxu0
        %v844 = vadd.f32 %v752, %v843
        %v845 = vpop.f32.mrb[0].mxu0
        %v846 = vpop.f32.mrb[0].mxu0
        %v847 = vadd.f32 %v752, %v846
        %v848 = vpop.f32.mrb[0].mxu0
        %849 = vmatprep.mubr.bf16.mxu0 0
        %850 = vmatmul.mubr.bf16.gmra.mrb[0].mxu0 %v742
        %v851 = vpop.f32.mrb[0].mxu0
        %v852 = vadd.f32 %v752, %v851
        %v853 = vpop.f32.mrb[0].mxu0
        %v854 = vpop.f32.mrb[0].mxu0
        %v855 = vadd.f32 %v752, %v854
        %v856 = vpop.f32.mrb[0].mxu0
        %857 = vmatprep.mubr.bf16.mxu0 0
        %858 = vmatmul.mubr.bf16.gmra.mrb[0].mxu0 %v743
        %v859 = vpop.f32.mrb[0].mxu0
        %v860 = vadd.f32 %v752, %v859
        %v861 = vpop.f32.mrb[0].mxu0
        %v862 = vpop.f32.mrb[0].mxu0
        %v863 = vadd.f32 %v752, %v862
        %v864 = vpop.f32.mrb[0].mxu0
        %865 = vmatprep.mubr.bf16.mxu0 0
        %866 = vmatmul.mubr.bf16.gmra.mrb[0].mxu0 %v744
        %v867 = vpop.f32.mrb[0].mxu0
        %v868 = vadd.f32 %v752, %v867
        %v869 = vpop.f32.mrb[0].mxu0
        %v870 = vpop.f32.mrb[0].mxu0
        %v871 = vadd.f32 %v752, %v870
        %v872 = vpop.f32.mrb[0].mxu0
        %873 = vmatprep.mubr.bf16.mxu0 0
        %874 = vmatmul.mubr.bf16.gmra.mrb[0].mxu0 %v745
        %v875 = vpop.f32.mrb[0].mxu0
        %v876 = vadd.f32 %v752, %v875
        %v877 = vpop.f32.mrb[0].mxu0
        %v878 = vpop.f32.mrb[0].mxu0
        %v879 = vadd.f32 %v752, %v878
        %v880 = vpop.f32.mrb[0].mxu0
        %881 = vmatprep.mubr.bf16.mxu0 0
        %882 = vmatmul.mubr.bf16.gmra.mrb[0].mxu0 %v746
        %v883 = vpop.f32.mrb[0].mxu0
        %v884 = vadd.f32 %v752, %v883
        %v885 = vpop.f32.mrb[0].mxu0
        %v886 = vpop.f32.mrb[0].mxu0
        %v887 = vadd.f32 %v752, %v886
        %v888 = vpop.f32.mrb[0].mxu0
        %889 = vmatprep.mubr.bf16.mxu0 0
        %890 = vmatmul.mubr.bf16.gmra.mrb[0].mxu0 %v747
        %v891 = vpop.f32.mrb[0].mxu0
        %v892 = vadd.f32 %v752, %v891
        %v893 = vpop.f32.mrb[0].mxu0
        %v894 = vpop.f32.mrb[0].mxu0
        %v895 = vadd.f32 %v752, %v894
        %v896 = vpop.f32.mrb[0].mxu0
        %897 = vdwg.mxu0
        %v898 = vld [vmem:[%s4 + $0x3] sm:$0x1]
        %v899 = vlaneseq
        %v900 = vshrl.u32 %v899, 7
        %v901 = vsub.s32 0, %v900
        %v902 = vrot.slane %v898, %v901
        %v903 = vmul.f32 %v902, %v836
        %v904 = vmul.f32 %v902, %v839
        %v905 = vmul.f32 %v902, %v844
        %v906 = vmul.f32 %v902, %v847
        %v907 = vmul.f32 %v902, %v852
        %v908 = vmul.f32 %v902, %v855
        %v909 = vmul.f32 %v902, %v860
        %v910 = vmul.f32 %v902, %v863
        %v911 = vmul.f32 %v902, %v868
        %v912 = vmul.f32 %v902, %v871
        %v913 = vmul.f32 %v902, %v876
        %v914 = vmul.f32 %v902, %v879
        %v915 = vmul.f32 %v902, %v884
        %v916 = vmul.f32 %v902, %v887
        %v917 = vmul.f32 %v902, %v892
        %v918 = vmul.f32 %v902, %v895
        %v919 = vld [vmem:[%s4 + $0x4] sm:$0x1]
        %v920 = vlaneseq
        %v921 = vshrl.u32 %v920, 7
        %v922 = vsub.s32 0, %v921
        %v923 = vrot.slane %v919, %v922
        %v924 = vadd.f32 %v903, %v923
        %v925 = vadd.f32 %v904, %v923
        %v926 = vadd.f32 %v905, %v923
        %v927 = vadd.f32 %v906, %v923
        %v928 = vadd.f32 %v907, %v923
        %v929 = vadd.f32 %v908, %v923
        %v930 = vadd.f32 %v909, %v923
        %v931 = vadd.f32 %v910, %v923
        %v932 = vadd.f32 %v911, %v923
        %v933 = vadd.f32 %v912, %v923
        %v934 = vadd.f32 %v913, %v923
        %v935 = vadd.f32 %v914, %v923
        %v936 = vadd.f32 %v915, %v923
        %v937 = vadd.f32 %v916, %v923
        %v938 = vadd.f32 %v917, %v923
        %v939 = vadd.f32 %v918, %v923
        %v940 = vxor.u32 %v924, 2147483648
        %v941 = vxor.u32 %v925, 2147483648
        %v942 = vxor.u32 %v926, 2147483648
        %v943 = vxor.u32 %v927, 2147483648
        %v944 = vxor.u32 %v928, 2147483648
        %v945 = vxor.u32 %v929, 2147483648
        %v946 = vxor.u32 %v930, 2147483648
        %v947 = vxor.u32 %v931, 2147483648
        %v948 = vxor.u32 %v932, 2147483648
        %v949 = vxor.u32 %v933, 2147483648
        %v950 = vxor.u32 %v934, 2147483648
        %v951 = vxor.u32 %v935, 2147483648
        %v952 = vxor.u32 %v936, 2147483648
        %v953 = vxor.u32 %v937, 2147483648
        %v954 = vxor.u32 %v938, 2147483648
        %v955 = vxor.u32 %v939, 2147483648
        %v956 = vmul.f32 %v940, 1.442695
        %v957 = vpow.pop %v956
        %v958 = vmul.f32 %v941, 1.442695
        %v959 = vpow.pop %v958
        %v960 = vmul.f32 %v942, 1.442695
        %v961 = vpow.pop %v960
        %v962 = vmul.f32 %v943, 1.442695
        %v963 = vpow.pop %v962
        %v964 = vmul.f32 %v944, 1.442695
        %v965 = vpow.pop %v964
        %v966 = vmul.f32 %v945, 1.442695
        %v967 = vpow.pop %v966
        %v968 = vmul.f32 %v946, 1.442695
        %v969 = vpow.pop %v968
        %v970 = vmul.f32 %v947, 1.442695
        %v971 = vpow.pop %v970
        %v972 = vmul.f32 %v948, 1.442695
        %v973 = vpow.pop %v972
        %v974 = vmul.f32 %v949, 1.442695
        %v975 = vpow.pop %v974
        %v976 = vmul.f32 %v950, 1.442695
        %v977 = vpow.pop %v976
        %v978 = vmul.f32 %v951, 1.442695
        %v979 = vpow.pop %v978
        %v980 = vmul.f32 %v952, 1.442695
        %v981 = vpow.pop %v980
        %v982 = vmul.f32 %v953, 1.442695
        %v983 = vpow.pop %v982
        %v984 = vmul.f32 %v954, 1.442695
        %v985 = vpow.pop %v984
        %v986 = vmul.f32 %v955, 1.442695
        %v987 = vpow.pop %v986
        %v988 = vadd.f32 %v957, 1.0
        %v989 = vadd.f32 %v959, 1.0
        %v990 = vadd.f32 %v961, 1.0
        %v991 = vadd.f32 %v963, 1.0
        %v992 = vadd.f32 %v965, 1.0
        %v993 = vadd.f32 %v967, 1.0
        %v994 = vadd.f32 %v969, 1.0
        %v995 = vadd.f32 %v971, 1.0
        %v996 = vadd.f32 %v973, 1.0
        %v997 = vadd.f32 %v975, 1.0
        %v998 = vadd.f32 %v977, 1.0
        %v999 = vadd.f32 %v979, 1.0
        %v1000 = vadd.f32 %v981, 1.0
        %v1001 = vadd.f32 %v983, 1.0
        %v1002 = vadd.f32 %v985, 1.0
        %v1003 = vadd.f32 %v987, 1.0
        %v1004 = vrcp.pop %v988
        %v1005 = vmul.f32 1.0, %v1004
        %v1006 = vrcp.pop %v989
        %v1007 = vmul.f32 1.0, %v1006
        %v1008 = vrcp.pop %v990
        %v1009 = vmul.f32 1.0, %v1008
        %v1010 = vrcp.pop %v991
        %v1011 = vmul.f32 1.0, %v1010
        %v1012 = vrcp.pop %v992
        %v1013 = vmul.f32 1.0, %v1012
        %v1014 = vrcp.pop %v993
        %v1015 = vmul.f32 1.0, %v1014
        %v1016 = vrcp.pop %v994
        %v1017 = vmul.f32 1.0, %v1016
        %v1018 = vrcp.pop %v995
        %v1019 = vmul.f32 1.0, %v1018
        %v1020 = vrcp.pop %v996
        %v1021 = vmul.f32 1.0, %v1020
        %v1022 = vrcp.pop %v997
        %v1023 = vmul.f32 1.0, %v1022
        %v1024 = vrcp.pop %v998
        %v1025 = vmul.f32 1.0, %v1024
        %v1026 = vrcp.pop %v999
        %v1027 = vmul.f32 1.0, %v1026
        %v1028 = vrcp.pop %v1000
        %v1029 = vmul.f32 1.0, %v1028
        %v1030 = vrcp.pop %v1001
        %v1031 = vmul.f32 1.0, %v1030
        %v1032 = vrcp.pop %v1002
        %v1033 = vmul.f32 1.0, %v1032
        %v1034 = vrcp.pop %v1003
        %v1035 = vmul.f32 1.0, %v1034
        %v1036 = vmul.f32 %v924, %v1005
        %v1037 = vmul.f32 %v925, %v1007
        %v1038 = vmul.f32 %v926, %v1009
        %v1039 = vmul.f32 %v927, %v1011
        %v1040 = vmul.f32 %v928, %v1013
        %v1041 = vmul.f32 %v929, %v1015
        %v1042 = vmul.f32 %v930, %v1017
        %v1043 = vmul.f32 %v931, %v1019
        %v1044 = vmul.f32 %v932, %v1021
        %v1045 = vmul.f32 %v933, %v1023
        %v1046 = vmul.f32 %v934, %v1025
        %v1047 = vmul.f32 %v935, %v1027
        %v1048 = vmul.f32 %v936, %v1029
        %v1049 = vmul.f32 %v937, %v1031
        %v1050 = vmul.f32 %v938, %v1033
        %v1051 = vmul.f32 %v939, %v1035
        %v1052 = vpack.c.bf16 %v1037, %v1036
        %v1053 = vpack.c.bf16 %v1039, %v1038
        %v1054 = vpack.c.bf16 %v1041, %v1040
        %v1055 = vpack.c.bf16 %v1043, %v1042
        %v1056 = vpack.c.bf16 %v1045, %v1044
        %v1057 = vpack.c.bf16 %v1047, %v1046
        %v1058 = vpack.c.bf16 %v1049, %v1048
        %v1059 = vpack.c.bf16 %v1051, %v1050
        %1060 = vmatprep.subr.bf16.mxu0 0
        %1061 = vmatpush1.bf16.msra.mxu0 %v1052
        %1062 = vmatprep.subr.bf16.mxu0 0
        %1063 = vmatpush1.bf16.msra.mxu0 %v1053
        %1064 = vmatprep.subr.bf16.mxu0 0
        %1065 = vmatpush1.bf16.msra.mxu0 %v1054
        %1066 = vmatprep.subr.bf16.mxu0 0
        %1067 = vmatpush1.bf16.msra.mxu0 %v1055
        %1068 = vmatprep.subr.bf16.mxu0 0
        %1069 = vmatpush1.bf16.msra.mxu0 %v1056
        %1070 = vmatprep.subr.bf16.mxu0 0
        %1071 = vmatpush1.bf16.msra.mxu0 %v1057
        %1072 = vmatprep.subr.bf16.mxu0 0
        %1073 = vmatpush1.bf16.msra.mxu0 %v1058
        %1074 = vmatprep.subr.bf16.mxu0 0
        %1075 = vmatpush1.bf16.msra.mxu0 %v1059
        %1076 = vmatprep.subr.bf16.mxu0 0
        %1077 = vmatpush1.bf16.msra.mxu0 0
        %1078 = vmatprep.subr.bf16.mxu0 0
        %1079 = vmatpush1.bf16.msra.mxu0 0
        %1080 = vmatprep.subr.bf16.mxu0 0
        %1081 = vmatpush1.bf16.msra.mxu0 0
        %1082 = vmatprep.subr.bf16.mxu0 0
        %1083 = vmatpush1.bf16.msra.mxu0 0
        %1084 = vmatprep.subr.bf16.mxu0 0
        %1085 = vmatpush1.bf16.msra.mxu0 0
        %1086 = vmatprep.subr.bf16.mxu0 0
        %1087 = vmatpush1.bf16.msra.mxu0 0
        %1088 = vmatprep.subr.bf16.mxu0 0
        %1089 = vmatpush1.bf16.msra.mxu0 0
        %1090 = vmatprep.subr.bf16.mxu0 0
        %1091 = vmatpush1.bf16.msra.mxu0 0
        %1092 = vmatprep.mubr.bf16.mxu0 0
        %1093 = vmatmul.mubr.bf16.gmra.mrb[0].mxu0 %v336
        %v1094 = vpop.f32.mrb[0].mxu0
        %v1095 = vadd.f32 0.0, %v1094
        %v1096 = vpop.f32.mrb[0].mxu0
        %v1097 = vpop.f32.mrb[0].mxu0
        %v1098 = vadd.f32 0.0, %v1097
        %v1099 = vpop.f32.mrb[0].mxu0
        %1100 = vdwg.mxu0
        %v1101 = vld [vmem:[#allocation5 + $0x4] sm:$0xf]
        %v1102 = vld [vmem:[#allocation5 + $0x48] sm:$0xf]
        %v1103 = vld [vmem:[#allocation5 + $0x4c] sm:$0xf]
        %v1104 = vld [vmem:[#allocation5 + $0x50] sm:$0xf]
        %v1105 = vld [vmem:[#allocation5 + $0x54] sm:$0xf]
        %v1106 = vld [vmem:[#allocation5 + $0x58] sm:$0xf]
        %v1107 = vld [vmem:[#allocation5 + $0x5c] sm:$0xf]
        %v1108 = vld [vmem:[#allocation5 + $0x60] sm:$0xf]
        %v1109 = vld [vmem:[#allocation5 + $0x64] sm:$0xf]
        %v1110 = vld [vmem:[#allocation5 + $0x68] sm:$0xf]
        %v1111 = vld [vmem:[#allocation5 + $0x6c] sm:$0xf]
        %v1112 = vld [vmem:[#allocation5 + $0x70] sm:$0xf]
        %v1113 = vld [vmem:[#allocation5 + $0x74] sm:$0xf]
        %v1114 = vld [vmem:[#allocation5 + $0x78] sm:$0xf]
        %v1115 = vld [vmem:[#allocation5 + $0x7c] sm:$0xf]
        %v1116 = vld [vmem:[#allocation5 + $0x80] sm:$0xf]
        %v1117 = vld [vmem:[#allocation5 + $0x84] sm:$0xf]
        %v1118 = vld [vmem:[%s4 + $0x5] sm:$0x1]
        %v1119 = vlaneseq
        %v1120 = vshrl.u32 %v1119, 7
        %v1121 = vsub.s32 0, %v1120
        %v1122 = vrot.slane %v1118, %v1121
        %1131 = vrot.lane.b32.xlu0 %v568, 120
        %v1132 = vpop.permute.xlu0 %1131
        %1133 = vrot.lane.b32.xlu0 %v569, 120
        %v1134 = vpop.permute.xlu0 %1133
        %1135 = vrot.lane.b32.xlu0 %v570, 120
        %v1136 = vpop.permute.xlu0 %1135
        %1137 = vrot.lane.b32.xlu0 %v571, 120
        %v1138 = vpop.permute.xlu0 %1137
        %1139 = vrot.lane.b32.xlu0 %v572, 120
        %v1140 = vpop.permute.xlu0 %1139
        %1141 = vrot.lane.b32.xlu0 %v573, 120
        %v1142 = vpop.permute.xlu0 %1141
        %1143 = vrot.lane.b32.xlu0 %v574, 120
        %v1144 = vpop.permute.xlu0 %1143
        %1145 = vrot.lane.b32.xlu0 %v575, 120
        %v1146 = vpop.permute.xlu0 %1145
        %v1148 = vsel %vm598, %v1132, 0
        %v1151 = vsel %vm598, %v1134, 0
        %v1154 = vsel %vm598, %v1136, 0
        %v1157 = vsel %vm598, %v1138, 0
        %v1160 = vsel %vm598, %v1140, 0
        %v1163 = vsel %vm598, %v1142, 0
        %v1166 = vsel %vm598, %v1144, 0
        %v1169 = vsel %vm598, %v1146, 0
        %v1172 = vsel %vm623, %v1101, 0
        %1174 = vmatprep.subr.bf16.mxu0 0
        %1175 = vmatpush1.bf16.msra.mxu0 %v1172
        %1176 = vmatprep.subr.bf16.mxu0 0
        %1177 = vmatpush1.bf16.msra.mxu0 0
        %1178 = vmatprep.subr.bf16.mxu0 0
        %1179 = vmatpush1.bf16.msra.mxu0 0
        %1180 = vmatprep.subr.bf16.mxu0 0
        %1181 = vmatpush1.bf16.msra.mxu0 0
        %1182 = vmatprep.subr.bf16.mxu0 0
        %1183 = vmatpush1.bf16.msra.mxu0 0
        %1184 = vmatprep.subr.bf16.mxu0 0
        %1185 = vmatpush1.bf16.msra.mxu0 0
        %1186 = vmatprep.subr.bf16.mxu0 0
        %1187 = vmatpush1.bf16.msra.mxu0 0
        %1188 = vmatprep.subr.bf16.mxu0 0
        %1189 = vmatpush1.bf16.msra.mxu0 0
        %1190 = vmatprep.subr.bf16.mxu0 0
        %1191 = vmatpush1.bf16.msra.mxu0 0
        %1192 = vmatprep.subr.bf16.mxu0 0
        %1193 = vmatpush1.bf16.msra.mxu0 0
        %1194 = vmatprep.subr.bf16.mxu0 0
        %1195 = vmatpush1.bf16.msra.mxu0 0
        %1196 = vmatprep.subr.bf16.mxu0 0
        %1197 = vmatpush1.bf16.msra.mxu0 0
        %1198 = vmatprep.subr.bf16.mxu0 0
        %1199 = vmatpush1.bf16.msra.mxu0 0
        %1200 = vmatprep.subr.bf16.mxu0 0
        %1201 = vmatpush1.bf16.msra.mxu0 0
        %1202 = vmatprep.subr.bf16.mxu0 0
        %1203 = vmatpush1.bf16.msra.mxu0 0
        %1204 = vmatprep.subr.bf16.mxu0 0
        %1205 = vmatpush1.bf16.msra.mxu0 0
        %1206 = vmatprep.mubr.bf16.mxu0 0
        %1207 = vmatmul.mubr.bf16.gmra.mrb[0].mxu0 %v1148
        %v1208 = vpop.f32.mrb[0].mxu0
        %v1209 = vadd.f32 %v1122, %v1208
        %v1210 = vpop.f32.mrb[0].mxu0
        %v1211 = vpop.f32.mrb[0].mxu0
        %v1212 = vadd.f32 %v1122, %v1211
        %v1213 = vpop.f32.mrb[0].mxu0
        %1214 = vmatprep.mubr.bf16.mxu0 0
        %1215 = vmatmul.mubr.bf16.gmra.mrb[0].mxu0 %v1151
        %v1216 = vpop.f32.mrb[0].mxu0
        %v1217 = vadd.f32 %v1122, %v1216
        %v1218 = vpop.f32.mrb[0].mxu0
        %v1219 = vpop.f32.mrb[0].mxu0
        %v1220 = vadd.f32 %v1122, %v1219
        %v1221 = vpop.f32.mrb[0].mxu0
        %1222 = vmatprep.mubr.bf16.mxu0 0
        %1223 = vmatmul.mubr.bf16.gmra.mrb[0].mxu0 %v1154
        %v1224 = vpop.f32.mrb[0].mxu0
        %v1225 = vadd.f32 %v1122, %v1224
        %v1226 = vpop.f32.mrb[0].mxu0
        %v1227 = vpop.f32.mrb[0].mxu0
        %v1228 = vadd.f32 %v1122, %v1227
        %v1229 = vpop.f32.mrb[0].mxu0
        %1230 = vmatprep.mubr.bf16.mxu0 0
        %1231 = vmatmul.mubr.bf16.gmra.mrb[0].mxu0 %v1157
        %v1232 = vpop.f32.mrb[0].mxu0
        %v1233 = vadd.f32 %v1122, %v1232
        %v1234 = vpop.f32.mrb[0].mxu0
        %v1235 = vpop.f32.mrb[0].mxu0
        %v1236 = vadd.f32 %v1122, %v1235
        %v1237 = vpop.f32.mrb[0].mxu0
        %1238 = vmatprep.mubr.bf16.mxu0 0
        %1239 = vmatmul.mubr.bf16.gmra.mrb[0].mxu0 %v1160
        %v1240 = vpop.f32.mrb[0].mxu0
        %v1241 = vadd.f32 %v1122, %v1240
        %v1242 = vpop.f32.mrb[0].mxu0
        %v1243 = vpop.f32.mrb[0].mxu0
        %v1244 = vadd.f32 %v1122, %v1243
        %v1245 = vpop.f32.mrb[0].mxu0
        %1246 = vmatprep.mubr.bf16.mxu0 0
        %1247 = vmatmul.mubr.bf16.gmra.mrb[0].mxu0 %v1163
        %v1248 = vpop.f32.mrb[0].mxu0
        %v1249 = vadd.f32 %v1122, %v1248
        %v1250 = vpop.f32.mrb[0].mxu0
        %v1251 = vpop.f32.mrb[0].mxu0
        %v1252 = vadd.f32 %v1122, %v1251
        %v1253 = vpop.f32.mrb[0].mxu0
        %1254 = vmatprep.mubr.bf16.mxu0 0
        %1255 = vmatmul.mubr.bf16.gmra.mrb[0].mxu0 %v1166
        %v1256 = vpop.f32.mrb[0].mxu0
        %v1257 = vadd.f32 %v1122, %v1256
        %v1258 = vpop.f32.mrb[0].mxu0
        %v1259 = vpop.f32.mrb[0].mxu0
        %v1260 = vadd.f32 %v1122, %v1259
        %v1261 = vpop.f32.mrb[0].mxu0
        %1262 = vmatprep.mubr.bf16.mxu0 0
        %1263 = vmatmul.mubr.bf16.gmra.mrb[0].mxu0 %v1169
        %v1264 = vpop.f32.mrb[0].mxu0
        %v1265 = vadd.f32 %v1122, %v1264
        %v1266 = vpop.f32.mrb[0].mxu0
        %v1267 = vpop.f32.mrb[0].mxu0
        %v1268 = vadd.f32 %v1122, %v1267
        %v1269 = vpop.f32.mrb[0].mxu0
        %1270 = vdwg.mxu0
        %v1271 = vmax.f32 %v1209, 0.0
        %v1272 = vmax.f32 %v1212, 0.0
        %v1273 = vmax.f32 %v1217, 0.0
        %v1274 = vmax.f32 %v1220, 0.0
        %v1275 = vmax.f32 %v1225, 0.0
        %v1276 = vmax.f32 %v1228, 0.0
        %v1277 = vmax.f32 %v1233, 0.0
        %v1278 = vmax.f32 %v1236, 0.0
        %v1279 = vmax.f32 %v1241, 0.0
        %v1280 = vmax.f32 %v1244, 0.0
        %v1281 = vmax.f32 %v1249, 0.0
        %v1282 = vmax.f32 %v1252, 0.0
        %v1283 = vmax.f32 %v1257, 0.0
        %v1284 = vmax.f32 %v1260, 0.0
        %v1285 = vmax.f32 %v1265, 0.0
        %v1286 = vmax.f32 %v1268, 0.0
        %v1287 = vpack.c.bf16 %v1272, %v1271
        %v1288 = vpack.c.bf16 %v1274, %v1273
        %v1289 = vpack.c.bf16 %v1276, %v1275
        %v1290 = vpack.c.bf16 %v1278, %v1277
        %v1291 = vpack.c.bf16 %v1280, %v1279
        %v1292 = vpack.c.bf16 %v1282, %v1281
        %v1293 = vpack.c.bf16 %v1284, %v1283
        %v1294 = vpack.c.bf16 %v1286, %v1285
        %v1295 = vld [vmem:[%s4 + $0x6] sm:$0x1]
        %v1296 = vlaneseq
        %v1297 = vshrl.u32 %v1296, 7
        %v1298 = vsub.s32 0, %v1297
        %v1299 = vrot.slane %v1295, %v1298
        %v1316 = vunpack.c.l.b16 %v1102
        %v1317 = vunpack.c.l.b16 %v1103
        %v1318 = vunpack.c.l.b16 %v1104
        %v1319 = vunpack.c.l.b16 %v1105
        %v1320 = vunpack.c.l.b16 %v1106
        %v1321 = vunpack.c.l.b16 %v1107
        %v1322 = vunpack.c.l.b16 %v1108
        %v1323 = vunpack.c.l.b16 %v1109
        %v1324 = vunpack.c.l.b16 %v1110
        %v1325 = vunpack.c.l.b16 %v1111
        %v1326 = vunpack.c.l.b16 %v1112
        %v1327 = vunpack.c.l.b16 %v1113
        %v1328 = vunpack.c.l.b16 %v1114
        %v1329 = vunpack.c.l.b16 %v1115
        %v1330 = vunpack.c.l.b16 %v1116
        %v1331 = vunpack.c.l.b16 %v1117
        %v1332 = vpack.c.b16 %v1317, %v1316
        %v1333 = vpack.c.b16 %v1319, %v1318
        %v1334 = vpack.c.b16 %v1321, %v1320
        %v1335 = vpack.c.b16 %v1323, %v1322
        %v1336 = vpack.c.b16 %v1325, %v1324
        %v1337 = vpack.c.b16 %v1327, %v1326
        %v1338 = vpack.c.b16 %v1329, %v1328
        %v1339 = vpack.c.b16 %v1331, %v1330
        %1348 = vmatprep.subr.bf16.mxu0 0
        %1349 = vmatpush1.bf16.msra.mxu0 %v1332
        %1350 = vmatprep.subr.bf16.mxu0 0
        %1351 = vmatpush1.bf16.msra.mxu0 %v1333
        %1352 = vmatprep.subr.bf16.mxu0 0
        %1353 = vmatpush1.bf16.msra.mxu0 %v1334
        %1354 = vmatprep.subr.bf16.mxu0 0
        %1355 = vmatpush1.bf16.msra.mxu0 %v1335
        %1356 = vmatprep.subr.bf16.mxu0 0
        %1357 = vmatpush1.bf16.msra.mxu0 %v1336
        %1358 = vmatprep.subr.bf16.mxu0 0
        %1359 = vmatpush1.bf16.msra.mxu0 %v1337
        %1360 = vmatprep.subr.bf16.mxu0 0
        %1361 = vmatpush1.bf16.msra.mxu0 %v1338
        %1362 = vmatprep.subr.bf16.mxu0 0
        %1363 = vmatpush1.bf16.msra.mxu0 %v1339
        %1364 = vmatprep.subr.bf16.mxu0 0
        %1365 = vmatpush1.bf16.msra.mxu0 0
        %1366 = vmatprep.subr.bf16.mxu0 0
        %1367 = vmatpush1.bf16.msra.mxu0 0
        %1368 = vmatprep.subr.bf16.mxu0 0
        %1369 = vmatpush1.bf16.msra.mxu0 0
        %1370 = vmatprep.subr.bf16.mxu0 0
        %1371 = vmatpush1.bf16.msra.mxu0 0
        %1372 = vmatprep.subr.bf16.mxu0 0
        %1373 = vmatpush1.bf16.msra.mxu0 0
        %1374 = vmatprep.subr.bf16.mxu0 0
        %1375 = vmatpush1.bf16.msra.mxu0 0
        %1376 = vmatprep.subr.bf16.mxu0 0
        %1377 = vmatpush1.bf16.msra.mxu0 0
        %1378 = vmatprep.subr.bf16.mxu0 0
        %1379 = vmatpush1.bf16.msra.mxu0 0
        %1380 = vmatprep.mubr.bf16.mxu0 0
        %1381 = vmatmul.mubr.bf16.gmra.mrb[0].mxu0 %v1287
        %v1382 = vpop.f32.mrb[0].mxu0
        %v1383 = vadd.f32 %v1299, %v1382
        %v1384 = vpop.f32.mrb[0].mxu0
        %v1385 = vpop.f32.mrb[0].mxu0
        %v1386 = vadd.f32 %v1299, %v1385
        %v1387 = vpop.f32.mrb[0].mxu0
        %1388 = vmatprep.mubr.bf16.mxu0 0
        %1389 = vmatmul.mubr.bf16.gmra.mrb[0].mxu0 %v1288
        %v1390 = vpop.f32.mrb[0].mxu0
        %v1391 = vadd.f32 %v1299, %v1390
        %v1392 = vpop.f32.mrb[0].mxu0
        %v1393 = vpop.f32.mrb[0].mxu0
        %v1394 = vadd.f32 %v1299, %v1393
        %v1395 = vpop.f32.mrb[0].mxu0
        %1396 = vmatprep.mubr.bf16.mxu0 0
        %1397 = vmatmul.mubr.bf16.gmra.mrb[0].mxu0 %v1289
        %v1398 = vpop.f32.mrb[0].mxu0
        %v1399 = vadd.f32 %v1299, %v1398
        %v1400 = vpop.f32.mrb[0].mxu0
        %v1401 = vpop.f32.mrb[0].mxu0
        %v1402 = vadd.f32 %v1299, %v1401
        %v1403 = vpop.f32.mrb[0].mxu0
        %1404 = vmatprep.mubr.bf16.mxu0 0
        %1405 = vmatmul.mubr.bf16.gmra.mrb[0].mxu0 %v1290
        %v1406 = vpop.f32.mrb[0].mxu0
        %v1407 = vadd.f32 %v1299, %v1406
        %v1408 = vpop.f32.mrb[0].mxu0
        %v1409 = vpop.f32.mrb[0].mxu0
        %v1410 = vadd.f32 %v1299, %v1409
        %v1411 = vpop.f32.mrb[0].mxu0
        %1412 = vmatprep.mubr.bf16.mxu0 0
        %1413 = vmatmul.mubr.bf16.gmra.mrb[0].mxu0 %v1291
        %v1414 = vpop.f32.mrb[0].mxu0
        %v1415 = vadd.f32 %v1299, %v1414
        %v1416 = vpop.f32.mrb[0].mxu0
        %v1417 = vpop.f32.mrb[0].mxu0
        %v1418 = vadd.f32 %v1299, %v1417
        %v1419 = vpop.f32.mrb[0].mxu0
        %1420 = vmatprep.mubr.bf16.mxu0 0
        %1421 = vmatmul.mubr.bf16.gmra.mrb[0].mxu0 %v1292
        %v1422 = vpop.f32.mrb[0].mxu0
        %v1423 = vadd.f32 %v1299, %v1422
        %v1424 = vpop.f32.mrb[0].mxu0
        %v1425 = vpop.f32.mrb[0].mxu0
        %v1426 = vadd.f32 %v1299, %v1425
        %v1427 = vpop.f32.mrb[0].mxu0
        %1428 = vmatprep.mubr.bf16.mxu0 0
        %1429 = vmatmul.mubr.bf16.gmra.mrb[0].mxu0 %v1293
        %v1430 = vpop.f32.mrb[0].mxu0
        %v1431 = vadd.f32 %v1299, %v1430
        %v1432 = vpop.f32.mrb[0].mxu0
        %v1433 = vpop.f32.mrb[0].mxu0
        %v1434 = vadd.f32 %v1299, %v1433
        %v1435 = vpop.f32.mrb[0].mxu0
        %1436 = vmatprep.mubr.bf16.mxu0 0
        %1437 = vmatmul.mubr.bf16.gmra.mrb[0].mxu0 %v1294
        %v1438 = vpop.f32.mrb[0].mxu0
        %v1439 = vadd.f32 %v1299, %v1438
        %v1440 = vpop.f32.mrb[0].mxu0
        %v1441 = vpop.f32.mrb[0].mxu0
        %v1442 = vadd.f32 %v1299, %v1441
        %v1443 = vpop.f32.mrb[0].mxu0
        %1444 = vdwg.mxu0
        %v1445 = vld [vmem:[%s4 + $0x7] sm:$0x1]
        %v1446 = vlaneseq
        %v1447 = vshrl.u32 %v1446, 7
        %v1448 = vsub.s32 0, %v1447
        %v1449 = vrot.slane %v1445, %v1448
        %v1450 = vmul.f32 %v1449, %v1383
        %v1451 = vmul.f32 %v1449, %v1386
        %v1452 = vmul.f32 %v1449, %v1391
        %v1453 = vmul.f32 %v1449, %v1394
        %v1454 = vmul.f32 %v1449, %v1399
        %v1455 = vmul.f32 %v1449, %v1402
        %v1456 = vmul.f32 %v1449, %v1407
        %v1457 = vmul.f32 %v1449, %v1410
        %v1458 = vmul.f32 %v1449, %v1415
        %v1459 = vmul.f32 %v1449, %v1418
        %v1460 = vmul.f32 %v1449, %v1423
        %v1461 = vmul.f32 %v1449, %v1426
        %v1462 = vmul.f32 %v1449, %v1431
        %v1463 = vmul.f32 %v1449, %v1434
        %v1464 = vmul.f32 %v1449, %v1439
        %v1465 = vmul.f32 %v1449, %v1442
        %v1466 = vld [vmem:[%s4 + $0x8] sm:$0x1]
        %v1467 = vlaneseq
        %v1468 = vshrl.u32 %v1467, 7
        %v1469 = vsub.s32 0, %v1468
        %v1470 = vrot.slane %v1466, %v1469
        %v1471 = vadd.f32 %v1450, %v1470
        %v1472 = vadd.f32 %v1451, %v1470
        %v1473 = vadd.f32 %v1452, %v1470
        %v1474 = vadd.f32 %v1453, %v1470
        %v1475 = vadd.f32 %v1454, %v1470
        %v1476 = vadd.f32 %v1455, %v1470
        %v1477 = vadd.f32 %v1456, %v1470
        %v1478 = vadd.f32 %v1457, %v1470
        %v1479 = vadd.f32 %v1458, %v1470
        %v1480 = vadd.f32 %v1459, %v1470
        %v1481 = vadd.f32 %v1460, %v1470
        %v1482 = vadd.f32 %v1461, %v1470
        %v1483 = vadd.f32 %v1462, %v1470
        %v1484 = vadd.f32 %v1463, %v1470
        %v1485 = vadd.f32 %v1464, %v1470
        %v1486 = vadd.f32 %v1465, %v1470
        %v1487 = vxor.u32 %v1471, 2147483648
        %v1488 = vxor.u32 %v1472, 2147483648
        %v1489 = vxor.u32 %v1473, 2147483648
        %v1490 = vxor.u32 %v1474, 2147483648
        %v1491 = vxor.u32 %v1475, 2147483648
        %v1492 = vxor.u32 %v1476, 2147483648
        %v1493 = vxor.u32 %v1477, 2147483648
        %v1494 = vxor.u32 %v1478, 2147483648
        %v1495 = vxor.u32 %v1479, 2147483648
        %v1496 = vxor.u32 %v1480, 2147483648
        %v1497 = vxor.u32 %v1481, 2147483648
        %v1498 = vxor.u32 %v1482, 2147483648
        %v1499 = vxor.u32 %v1483, 2147483648
        %v1500 = vxor.u32 %v1484, 2147483648
        %v1501 = vxor.u32 %v1485, 2147483648
        %v1502 = vxor.u32 %v1486, 2147483648
        %v1503 = vmul.f32 %v1487, 1.442695
        %v1504 = vpow.pop %v1503
        %v1505 = vmul.f32 %v1488, 1.442695
        %v1506 = vpow.pop %v1505
        %v1507 = vmul.f32 %v1489, 1.442695
        %v1508 = vpow.pop %v1507
        %v1509 = vmul.f32 %v1490, 1.442695
        %v1510 = vpow.pop %v1509
        %v1511 = vmul.f32 %v1491, 1.442695
        %v1512 = vpow.pop %v1511
        %v1513 = vmul.f32 %v1492, 1.442695
        %v1514 = vpow.pop %v1513
        %v1515 = vmul.f32 %v1493, 1.442695
        %v1516 = vpow.pop %v1515
        %v1517 = vmul.f32 %v1494, 1.442695
        %v1518 = vpow.pop %v1517
        %v1519 = vmul.f32 %v1495, 1.442695
        %v1520 = vpow.pop %v1519
        %v1521 = vmul.f32 %v1496, 1.442695
        %v1522 = vpow.pop %v1521
        %v1523 = vmul.f32 %v1497, 1.442695
        %v1524 = vpow.pop %v1523
        %v1525 = vmul.f32 %v1498, 1.442695
        %v1526 = vpow.pop %v1525
        %v1527 = vmul.f32 %v1499, 1.442695
        %v1528 = vpow.pop %v1527
        %v1529 = vmul.f32 %v1500, 1.442695
        %v1530 = vpow.pop %v1529
        %v1531 = vmul.f32 %v1501, 1.442695
        %v1532 = vpow.pop %v1531
        %v1533 = vmul.f32 %v1502, 1.442695
        %v1534 = vpow.pop %v1533
        %v1535 = vadd.f32 %v1504, 1.0
        %v1536 = vadd.f32 %v1506, 1.0
        %v1537 = vadd.f32 %v1508, 1.0
        %v1538 = vadd.f32 %v1510, 1.0
        %v1539 = vadd.f32 %v1512, 1.0
        %v1540 = vadd.f32 %v1514, 1.0
        %v1541 = vadd.f32 %v1516, 1.0
        %v1542 = vadd.f32 %v1518, 1.0
        %v1543 = vadd.f32 %v1520, 1.0
        %v1544 = vadd.f32 %v1522, 1.0
        %v1545 = vadd.f32 %v1524, 1.0
        %v1546 = vadd.f32 %v1526, 1.0
        %v1547 = vadd.f32 %v1528, 1.0
        %v1548 = vadd.f32 %v1530, 1.0
        %v1549 = vadd.f32 %v1532, 1.0
        %v1550 = vadd.f32 %v1534, 1.0
        %v1551 = vrcp.pop %v1535
        %v1552 = vmul.f32 1.0, %v1551
        %v1553 = vrcp.pop %v1536
        %v1554 = vmul.f32 1.0, %v1553
        %v1555 = vrcp.pop %v1537
        %v1556 = vmul.f32 1.0, %v1555
        %v1557 = vrcp.pop %v1538
        %v1558 = vmul.f32 1.0, %v1557
        %v1559 = vrcp.pop %v1539
        %v1560 = vmul.f32 1.0, %v1559
        %v1561 = vrcp.pop %v1540
        %v1562 = vmul.f32 1.0, %v1561
        %v1563 = vrcp.pop %v1541
        %v1564 = vmul.f32 1.0, %v1563
        %v1565 = vrcp.pop %v1542
        %v1566 = vmul.f32 1.0, %v1565
        %v1567 = vrcp.pop %v1543
        %v1568 = vmul.f32 1.0, %v1567
        %v1569 = vrcp.pop %v1544
        %v1570 = vmul.f32 1.0, %v1569
        %v1571 = vrcp.pop %v1545
        %v1572 = vmul.f32 1.0, %v1571
        %v1573 = vrcp.pop %v1546
        %v1574 = vmul.f32 1.0, %v1573
        %v1575 = vrcp.pop %v1547
        %v1576 = vmul.f32 1.0, %v1575
        %v1577 = vrcp.pop %v1548
        %v1578 = vmul.f32 1.0, %v1577
        %v1579 = vrcp.pop %v1549
        %v1580 = vmul.f32 1.0, %v1579
        %v1581 = vrcp.pop %v1550
        %v1582 = vmul.f32 1.0, %v1581
        %v1583 = vmul.f32 %v1471, %v1552
        %v1584 = vmul.f32 %v1472, %v1554
        %v1585 = vmul.f32 %v1473, %v1556
        %v1586 = vmul.f32 %v1474, %v1558
        %v1587 = vmul.f32 %v1475, %v1560
        %v1588 = vmul.f32 %v1476, %v1562
        %v1589 = vmul.f32 %v1477, %v1564
        %v1590 = vmul.f32 %v1478, %v1566
        %v1591 = vmul.f32 %v1479, %v1568
        %v1592 = vmul.f32 %v1480, %v1570
        %v1593 = vmul.f32 %v1481, %v1572
        %v1594 = vmul.f32 %v1482, %v1574
        %v1595 = vmul.f32 %v1483, %v1576
        %v1596 = vmul.f32 %v1484, %v1578
        %v1597 = vmul.f32 %v1485, %v1580
        %v1598 = vmul.f32 %v1486, %v1582
        %v1599 = vpack.c.bf16 %v1584, %v1583
        %v1600 = vpack.c.bf16 %v1586, %v1585
        %v1601 = vpack.c.bf16 %v1588, %v1587
        %v1602 = vpack.c.bf16 %v1590, %v1589
        %v1603 = vpack.c.bf16 %v1592, %v1591
        %v1604 = vpack.c.bf16 %v1594, %v1593
        %v1605 = vpack.c.bf16 %v1596, %v1595
        %v1606 = vpack.c.bf16 %v1598, %v1597
        %1607 = vmatprep.subr.bf16.mxu0 0
        %1608 = vmatpush1.bf16.msra.mxu0 %v1599
        %1609 = vmatprep.subr.bf16.mxu0 0
        %1610 = vmatpush1.bf16.msra.mxu0 %v1600
        %1611 = vmatprep.subr.bf16.mxu0 0
        %1612 = vmatpush1.bf16.msra.mxu0 %v1601
        %1613 = vmatprep.subr.bf16.mxu0 0
        %1614 = vmatpush1.bf16.msra.mxu0 %v1602
        %1615 = vmatprep.subr.bf16.mxu0 0
        %1616 = vmatpush1.bf16.msra.mxu0 %v1603
        %1617 = vmatprep.subr.bf16.mxu0 0
        %1618 = vmatpush1.bf16.msra.mxu0 %v1604
        %1619 = vmatprep.subr.bf16.mxu0 0
        %1620 = vmatpush1.bf16.msra.mxu0 %v1605
        %1621 = vmatprep.subr.bf16.mxu0 0
        %1622 = vmatpush1.bf16.msra.mxu0 %v1606
        %1623 = vmatprep.subr.bf16.mxu0 0
        %1624 = vmatpush1.bf16.msra.mxu0 0
        %1625 = vmatprep.subr.bf16.mxu0 0
        %1626 = vmatpush1.bf16.msra.mxu0 0
        %1627 = vmatprep.subr.bf16.mxu0 0
        %1628 = vmatpush1.bf16.msra.mxu0 0
        %1629 = vmatprep.subr.bf16.mxu0 0
        %1630 = vmatpush1.bf16.msra.mxu0 0
        %1631 = vmatprep.subr.bf16.mxu0 0
        %1632 = vmatpush1.bf16.msra.mxu0 0
        %1633 = vmatprep.subr.bf16.mxu0 0
        %1634 = vmatpush1.bf16.msra.mxu0 0
        %1635 = vmatprep.subr.bf16.mxu0 0
        %1636 = vmatpush1.bf16.msra.mxu0 0
        %1637 = vmatprep.subr.bf16.mxu0 0
        %1638 = vmatpush1.bf16.msra.mxu0 0
        %1639 = vmatprep.mubr.bf16.mxu0 0
        %1640 = vmatmul.mubr.bf16.gmra.mrb[0].mxu0 %v336
        %v1641 = vpop.f32.mrb[0].mxu0
        %v1642 = vadd.f32 0.0, %v1641
        %v1643 = vpop.f32.mrb[0].mxu0
        %v1644 = vpop.f32.mrb[0].mxu0
        %v1645 = vadd.f32 0.0, %v1644
        %v1646 = vpop.f32.mrb[0].mxu0
        %1647 = vdwg.mxu0
        %v1648 = vld [vmem:[#allocation5 + $0x188] sm:$0xf]
        %v1649 = vld [vmem:[%s4 + $0x9] sm:$0x1]
        %v1650 = vlaneseq
        %v1651 = vshrl.u32 %v1650, 7
        %v1652 = vsub.s32 0, %v1651
        %v1653 = vrot.slane %v1649, %v1652
        %v1655 = vsel %vm598, %v337, 0
        %v1658 = vsel %vm623, %v1648, 0
        %1660 = vmatprep.subr.bf16.mxu0 0
        %1661 = vmatpush1.bf16.msra.mxu0 %v1658
        %1662 = vmatprep.subr.bf16.mxu0 0
        %1663 = vmatpush1.bf16.msra.mxu0 0
        %1664 = vmatprep.subr.bf16.mxu0 0
        %1665 = vmatpush1.bf16.msra.mxu0 0
        %1666 = vmatprep.subr.bf16.mxu0 0
        %1667 = vmatpush1.bf16.msra.mxu0 0
        %1668 = vmatprep.subr.bf16.mxu0 0
        %1669 = vmatpush1.bf16.msra.mxu0 0
        %1670 = vmatprep.subr.bf16.mxu0 0
        %1671 = vmatpush1.bf16.msra.mxu0 0
        %1672 = vmatprep.subr.bf16.mxu0 0
        %1673 = vmatpush1.bf16.msra.mxu0 0
        %1674 = vmatprep.subr.bf16.mxu0 0
        %1675 = vmatpush1.bf16.msra.mxu0 0
        %1676 = vmatprep.subr.bf16.mxu0 0
        %1677 = vmatpush1.bf16.msra.mxu0 0
        %1678 = vmatprep.subr.bf16.mxu0 0
        %1679 = vmatpush1.bf16.msra.mxu0 0
        %1680 = vmatprep.subr.bf16.mxu0 0
        %1681 = vmatpush1.bf16.msra.mxu0 0
        %1682 = vmatprep.subr.bf16.mxu0 0
        %1683 = vmatpush1.bf16.msra.mxu0 0
        %1684 = vmatprep.subr.bf16.mxu0 0
        %1685 = vmatpush1.bf16.msra.mxu0 0
        %1686 = vmatprep.subr.bf16.mxu0 0
        %1687 = vmatpush1.bf16.msra.mxu0 0
        %1688 = vmatprep.subr.bf16.mxu0 0
        %1689 = vmatpush1.bf16.msra.mxu0 0
        %1690 = vmatprep.subr.bf16.mxu0 0
        %1691 = vmatpush1.bf16.msra.mxu0 0
        %1692 = vmatprep.mubr.bf16.mxu0 0
        %1693 = vmatmul.mubr.bf16.gmra.mrb[0].mxu0 %v1655
        %v1694 = vpop.f32.mrb[0].mxu0
        %v1695 = vadd.f32 %v1653, %v1694
        %v1696 = vpop.f32.mrb[0].mxu0
        %v1697 = vpop.f32.mrb[0].mxu0
        %v1698 = vadd.f32 %v1653, %v1697
        %v1699 = vpop.f32.mrb[0].mxu0
        %1700 = vdwg.mxu0
        %v1701 = vpack.c.bf16 %v1098, %v1095
        %v1702 = vld [vmem:[#allocation5 + $0x88] sm:$0xf]
        %v1703 = vld [vmem:[#allocation5 + $0x8c] sm:$0xf]
        %v1704 = vld [vmem:[#allocation5 + $0x90] sm:$0xf]
        %v1705 = vld [vmem:[#allocation5 + $0x94] sm:$0xf]
        %v1706 = vld [vmem:[#allocation5 + $0x98] sm:$0xf]
        %v1707 = vld [vmem:[#allocation5 + $0x9c] sm:$0xf]
        %v1708 = vld [vmem:[#allocation5 + $0xa0] sm:$0xf]
        %v1709 = vld [vmem:[#allocation5 + $0xa4] sm:$0xf]
        %v1710 = vld [vmem:[#allocation5 + $0xa8] sm:$0xf]
        %v1711 = vld [vmem:[#allocation5 + $0xac] sm:$0xf]
        %v1712 = vld [vmem:[#allocation5 + $0xb0] sm:$0xf]
        %v1713 = vld [vmem:[#allocation5 + $0xb4] sm:$0xf]
        %v1714 = vld [vmem:[#allocation5 + $0xb8] sm:$0xf]
        %v1715 = vld [vmem:[#allocation5 + $0xbc] sm:$0xf]
        %v1716 = vld [vmem:[#allocation5 + $0xc0] sm:$0xf]
        %v1717 = vld [vmem:[#allocation5 + $0xc4] sm:$0xf]
        %v1718 = vpack.c.bf16 %v1645, %v1642
        %v1719 = vld [vmem:[#allocation5 + $0xc8] sm:$0xf]
        %v1720 = vld [vmem:[#allocation5 + $0xcc] sm:$0xf]
        %v1721 = vld [vmem:[#allocation5 + $0xd0] sm:$0xf]
        %v1722 = vld [vmem:[#allocation5 + $0xd4] sm:$0xf]
        %v1723 = vld [vmem:[#allocation5 + $0xd8] sm:$0xf]
        %v1724 = vld [vmem:[#allocation5 + $0xdc] sm:$0xf]
        %v1725 = vld [vmem:[#allocation5 + $0xe0] sm:$0xf]
        %v1726 = vld [vmem:[#allocation5 + $0xe4] sm:$0xf]
        %v1727 = vld [vmem:[#allocation5 + $0xe8] sm:$0xf]
        %v1728 = vld [vmem:[#allocation5 + $0xec] sm:$0xf]
        %v1729 = vld [vmem:[#allocation5 + $0xf0] sm:$0xf]
        %v1730 = vld [vmem:[#allocation5 + $0xf4] sm:$0xf]
        %v1731 = vld [vmem:[#allocation5 + $0xf8] sm:$0xf]
        %v1732 = vld [vmem:[#allocation5 + $0xfc] sm:$0xf]
        %v1733 = vld [vmem:[#allocation5 + $0x100] sm:$0xf]
        %v1734 = vld [vmem:[#allocation5 + $0x104] sm:$0xf]
        %v1751 = vunpack.c.l.b16 %v1719
        %v1752 = vunpack.c.l.b16 %v1720
        %v1753 = vunpack.c.l.b16 %v1721
        %v1754 = vunpack.c.l.b16 %v1722
        %v1755 = vunpack.c.l.b16 %v1723
        %v1756 = vunpack.c.l.b16 %v1724
        %v1757 = vunpack.c.l.b16 %v1725
        %v1758 = vunpack.c.l.b16 %v1726
        %v1759 = vunpack.c.l.b16 %v1727
        %v1760 = vunpack.c.l.b16 %v1728
        %v1761 = vunpack.c.l.b16 %v1729
        %v1762 = vunpack.c.l.b16 %v1730
        %v1763 = vunpack.c.l.b16 %v1731
        %v1764 = vunpack.c.l.b16 %v1732
        %v1765 = vunpack.c.l.b16 %v1733
        %v1766 = vunpack.c.l.b16 %v1734
        %v1767 = vpack.c.b16 %v1752, %v1751
        %v1768 = vpack.c.b16 %v1754, %v1753
        %v1769 = vpack.c.b16 %v1756, %v1755
        %v1770 = vpack.c.b16 %v1758, %v1757
        %v1771 = vpack.c.b16 %v1760, %v1759
        %v1772 = vpack.c.b16 %v1762, %v1761
        %v1773 = vpack.c.b16 %v1764, %v1763
        %v1774 = vpack.c.b16 %v1766, %v1765
        %1783 = vmatprep.subr.bf16.mxu0 0
        %1784 = vmatpush1.bf16.msra.mxu0 %v1767
        %1785 = vmatprep.subr.bf16.mxu0 0
        %1786 = vmatpush1.bf16.msra.mxu0 %v1768
        %1787 = vmatprep.subr.bf16.mxu0 0
        %1788 = vmatpush1.bf16.msra.mxu0 %v1769
        %1789 = vmatprep.subr.bf16.mxu0 0
        %1790 = vmatpush1.bf16.msra.mxu0 %v1770
        %1791 = vmatprep.subr.bf16.mxu0 0
        %1792 = vmatpush1.bf16.msra.mxu0 %v1771
        %1793 = vmatprep.subr.bf16.mxu0 0
        %1794 = vmatpush1.bf16.msra.mxu0 %v1772
        %1795 = vmatprep.subr.bf16.mxu0 0
        %1796 = vmatpush1.bf16.msra.mxu0 %v1773
        %1797 = vmatprep.subr.bf16.mxu0 0
        %1798 = vmatpush1.bf16.msra.mxu0 %v1774
        %1799 = vmatprep.subr.bf16.mxu0 0
        %1800 = vmatpush1.bf16.msra.mxu0 0
        %1801 = vmatprep.subr.bf16.mxu0 0
        %1802 = vmatpush1.bf16.msra.mxu0 0
        %1803 = vmatprep.subr.bf16.mxu0 0
        %1804 = vmatpush1.bf16.msra.mxu0 0
        %1805 = vmatprep.subr.bf16.mxu0 0
        %1806 = vmatpush1.bf16.msra.mxu0 0
        %1807 = vmatprep.subr.bf16.mxu0 0
        %1808 = vmatpush1.bf16.msra.mxu0 0
        %1809 = vmatprep.subr.bf16.mxu0 0
        %1810 = vmatpush1.bf16.msra.mxu0 0
        %1811 = vmatprep.subr.bf16.mxu0 0
        %1812 = vmatpush1.bf16.msra.mxu0 0
        %1813 = vmatprep.subr.bf16.mxu0 0
        %1814 = vmatpush1.bf16.msra.mxu0 0
        %1815 = vmatprep.mubr.bf16.mxu0 0
        %1816 = vmatmul.mubr.bf16.gmra.mrb[0].mxu0 %v1718
        %v1817 = vpop.f32.mrb[0].mxu0
        %v1818 = vadd.f32 0.0, %v1817
        %v1819 = vpop.f32.mrb[0].mxu0
        %v1820 = vpop.f32.mrb[0].mxu0
        %v1821 = vadd.f32 0.0, %v1820
        %v1822 = vpop.f32.mrb[0].mxu0
        %1823 = vdwg.mxu0
        %v1840 = vunpack.c.l.b16 %v1702
        %v1841 = vunpack.c.l.b16 %v1703
        %v1842 = vunpack.c.l.b16 %v1704
        %v1843 = vunpack.c.l.b16 %v1705
        %v1844 = vunpack.c.l.b16 %v1706
        %v1845 = vunpack.c.l.b16 %v1707
        %v1846 = vunpack.c.l.b16 %v1708
        %v1847 = vunpack.c.l.b16 %v1709
        %v1848 = vunpack.c.l.b16 %v1710
        %v1849 = vunpack.c.l.b16 %v1711
        %v1850 = vunpack.c.l.b16 %v1712
        %v1851 = vunpack.c.l.b16 %v1713
        %v1852 = vunpack.c.l.b16 %v1714
        %v1853 = vunpack.c.l.b16 %v1715
        %v1854 = vunpack.c.l.b16 %v1716
        %v1855 = vunpack.c.l.b16 %v1717
        %v1856 = vpack.c.b16 %v1841, %v1840
        %v1857 = vpack.c.b16 %v1843, %v1842
        %v1858 = vpack.c.b16 %v1845, %v1844
        %v1859 = vpack.c.b16 %v1847, %v1846
        %v1860 = vpack.c.b16 %v1849, %v1848
        %v1861 = vpack.c.b16 %v1851, %v1850
        %v1862 = vpack.c.b16 %v1853, %v1852
        %v1863 = vpack.c.b16 %v1855, %v1854
        %1872 = vmatprep.subr.bf16.mxu0 0
        %1873 = vmatpush1.bf16.msra.mxu0 %v1856
        %1874 = vmatprep.subr.bf16.mxu0 0
        %1875 = vmatpush1.bf16.msra.mxu0 %v1857
        %1876 = vmatprep.subr.bf16.mxu0 0
        %1877 = vmatpush1.bf16.msra.mxu0 %v1858
        %1878 = vmatprep.subr.bf16.mxu0 0
        %1879 = vmatpush1.bf16.msra.mxu0 %v1859
        %1880 = vmatprep.subr.bf16.mxu0 0
        %1881 = vmatpush1.bf16.msra.mxu0 %v1860
        %1882 = vmatprep.subr.bf16.mxu0 0
        %1883 = vmatpush1.bf16.msra.mxu0 %v1861
        %1884 = vmatprep.subr.bf16.mxu0 0
        %1885 = vmatpush1.bf16.msra.mxu0 %v1862
        %1886 = vmatprep.subr.bf16.mxu0 0
        %1887 = vmatpush1.bf16.msra.mxu0 %v1863
        %1888 = vmatprep.subr.bf16.mxu0 0
        %1889 = vmatpush1.bf16.msra.mxu0 0
        %1890 = vmatprep.subr.bf16.mxu0 0
        %1891 = vmatpush1.bf16.msra.mxu0 0
        %1892 = vmatprep.subr.bf16.mxu0 0
        %1893 = vmatpush1.bf16.msra.mxu0 0
        %1894 = vmatprep.subr.bf16.mxu0 0
        %1895 = vmatpush1.bf16.msra.mxu0 0
        %1896 = vmatprep.subr.bf16.mxu0 0
        %1897 = vmatpush1.bf16.msra.mxu0 0
        %1898 = vmatprep.subr.bf16.mxu0 0
        %1899 = vmatpush1.bf16.msra.mxu0 0
        %1900 = vmatprep.subr.bf16.mxu0 0
        %1901 = vmatpush1.bf16.msra.mxu0 0
        %1902 = vmatprep.subr.bf16.mxu0 0
        %1903 = vmatpush1.bf16.msra.mxu0 0
        %1904 = vmatprep.mubr.bf16.mxu0 0
        %1905 = vmatmul.mubr.bf16.gmra.mrb[0].mxu0 %v1701
        %v1906 = vpop.f32.mrb[0].mxu0
        %v1907 = vadd.f32 %v1818, %v1906
        %v1908 = vpop.f32.mrb[0].mxu0
        %v1909 = vpop.f32.mrb[0].mxu0
        %v1910 = vadd.f32 %v1821, %v1909
        %v1911 = vpop.f32.mrb[0].mxu0
        %1912 = vdwg.mxu0
        %v1913 = vpack.c.bf16 %v1698, %v1695
        %v1914 = vld [vmem:[#allocation5 + $0x108] sm:$0xf]
        %v1915 = vld [vmem:[#allocation5 + $0x10c] sm:$0xf]
        %v1916 = vld [vmem:[#allocation5 + $0x110] sm:$0xf]
        %v1917 = vld [vmem:[#allocation5 + $0x114] sm:$0xf]
        %v1918 = vld [vmem:[#allocation5 + $0x118] sm:$0xf]
        %v1919 = vld [vmem:[#allocation5 + $0x11c] sm:$0xf]
        %v1920 = vld [vmem:[#allocation5 + $0x120] sm:$0xf]
        %v1921 = vld [vmem:[#allocation5 + $0x124] sm:$0xf]
        %v1922 = vld [vmem:[#allocation5 + $0x128] sm:$0xf]
        %v1923 = vld [vmem:[#allocation5 + $0x12c] sm:$0xf]
        %v1924 = vld [vmem:[#allocation5 + $0x130] sm:$0xf]
        %v1925 = vld [vmem:[#allocation5 + $0x134] sm:$0xf]
        %v1926 = vld [vmem:[#allocation5 + $0x138] sm:$0xf]
        %v1927 = vld [vmem:[#allocation5 + $0x13c] sm:$0xf]
        %v1928 = vld [vmem:[#allocation5 + $0x140] sm:$0xf]
        %v1929 = vld [vmem:[#allocation5 + $0x144] sm:$0xf]
        %v1946 = vunpack.c.l.b16 %v1914
        %v1947 = vunpack.c.l.b16 %v1915
        %v1948 = vunpack.c.l.b16 %v1916
        %v1949 = vunpack.c.l.b16 %v1917
        %v1950 = vunpack.c.l.b16 %v1918
        %v1951 = vunpack.c.l.b16 %v1919
        %v1952 = vunpack.c.l.b16 %v1920
        %v1953 = vunpack.c.l.b16 %v1921
        %v1954 = vunpack.c.l.b16 %v1922
        %v1955 = vunpack.c.l.b16 %v1923
        %v1956 = vunpack.c.l.b16 %v1924
        %v1957 = vunpack.c.l.b16 %v1925
        %v1958 = vunpack.c.l.b16 %v1926
        %v1959 = vunpack.c.l.b16 %v1927
        %v1960 = vunpack.c.l.b16 %v1928
        %v1961 = vunpack.c.l.b16 %v1929
        %v1962 = vpack.c.b16 %v1947, %v1946
        %v1963 = vpack.c.b16 %v1949, %v1948
        %v1964 = vpack.c.b16 %v1951, %v1950
        %v1965 = vpack.c.b16 %v1953, %v1952
        %v1966 = vpack.c.b16 %v1955, %v1954
        %v1967 = vpack.c.b16 %v1957, %v1956
        %v1968 = vpack.c.b16 %v1959, %v1958
        %v1969 = vpack.c.b16 %v1961, %v1960
        %1978 = vmatprep.subr.bf16.mxu0 0
        %1979 = vmatpush1.bf16.msra.mxu0 %v1962
        %1980 = vmatprep.subr.bf16.mxu0 0
        %1981 = vmatpush1.bf16.msra.mxu0 %v1963
        %1982 = vmatprep.subr.bf16.mxu0 0
        %1983 = vmatpush1.bf16.msra.mxu0 %v1964
        %1984 = vmatprep.subr.bf16.mxu0 0
        %1985 = vmatpush1.bf16.msra.mxu0 %v1965
        %1986 = vmatprep.subr.bf16.mxu0 0
        %1987 = vmatpush1.bf16.msra.mxu0 %v1966
        %1988 = vmatprep.subr.bf16.mxu0 0
        %1989 = vmatpush1.bf16.msra.mxu0 %v1967
        %1990 = vmatprep.subr.bf16.mxu0 0
        %1991 = vmatpush1.bf16.msra.mxu0 %v1968
        %1992 = vmatprep.subr.bf16.mxu0 0
        %1993 = vmatpush1.bf16.msra.mxu0 %v1969
        %1994 = vmatprep.subr.bf16.mxu0 0
        %1995 = vmatpush1.bf16.msra.mxu0 0
        %1996 = vmatprep.subr.bf16.mxu0 0
        %1997 = vmatpush1.bf16.msra.mxu0 0
        %1998 = vmatprep.subr.bf16.mxu0 0
        %1999 = vmatpush1.bf16.msra.mxu0 0
        %2000 = vmatprep.subr.bf16.mxu0 0
        %2001 = vmatpush1.bf16.msra.mxu0 0
        %2002 = vmatprep.subr.bf16.mxu0 0
        %2003 = vmatpush1.bf16.msra.mxu0 0
        %2004 = vmatprep.subr.bf16.mxu0 0
        %2005 = vmatpush1.bf16.msra.mxu0 0
        %2006 = vmatprep.subr.bf16.mxu0 0
        %2007 = vmatpush1.bf16.msra.mxu0 0
        %2008 = vmatprep.subr.bf16.mxu0 0
        %2009 = vmatpush1.bf16.msra.mxu0 0
        %2010 = vmatprep.mubr.bf16.mxu0 0
        %2011 = vmatmul.mubr.bf16.gmra.mrb[0].mxu0 %v1913
        %v2012 = vpop.f32.mrb[0].mxu0
        %v2013 = vadd.f32 0.0, %v2012
        %v2014 = vpop.f32.mrb[0].mxu0
        %v2015 = vpop.f32.mrb[0].mxu0
        %v2016 = vadd.f32 0.0, %v2015
        %v2017 = vpop.f32.mrb[0].mxu0
        %2018 = vdwg.mxu0
        %v2019 = vadd.f32 %v1907, %v2013
        %v2020 = vadd.f32 %v1910, %v2016
        %v2021 = vld [vmem:[%s4 + $0xa] sm:$0x1]
        %v2022 = vlaneseq
        %v2023 = vshrl.u32 %v2022, 7
        %v2024 = vsub.s32 0, %v2023
        %v2025 = vrot.slane %v2021, %v2024
        %v2026 = vadd.f32 %v2019, %v2025
        %v2027 = vadd.f32 %v2020, %v2025
        %v2028 = vmax.f32 %v2026, 0.0
        %v2029 = vmax.f32 %v2027, 0.0
        %v2030 = vpack.c.bf16 %v2029, %v2028
        %v2031 = vld [vmem:[#allocation5 + $0x148] sm:$0xf]
        %v2032 = vld [vmem:[#allocation5 + $0x14c] sm:$0xf]
        %v2033 = vld [vmem:[#allocation5 + $0x150] sm:$0xf]
        %v2034 = vld [vmem:[#allocation5 + $0x154] sm:$0xf]
        %v2035 = vld [vmem:[#allocation5 + $0x158] sm:$0xf]
        %v2036 = vld [vmem:[#allocation5 + $0x15c] sm:$0xf]
        %v2037 = vld [vmem:[#allocation5 + $0x160] sm:$0xf]
        %v2038 = vld [vmem:[#allocation5 + $0x164] sm:$0xf]
        %v2039 = vld [vmem:[#allocation5 + $0x168] sm:$0xf]
        %v2040 = vld [vmem:[#allocation5 + $0x16c] sm:$0xf]
        %v2041 = vld [vmem:[#allocation5 + $0x170] sm:$0xf]
        %v2042 = vld [vmem:[#allocation5 + $0x174] sm:$0xf]
        %v2043 = vld [vmem:[#allocation5 + $0x178] sm:$0xf]
        %v2044 = vld [vmem:[#allocation5 + $0x17c] sm:$0xf]
        %v2045 = vld [vmem:[#allocation5 + $0x180] sm:$0xf]
        %v2046 = vld [vmem:[#allocation5 + $0x184] sm:$0xf]
        %v2047 = vld [vmem:[%s4 + $0xb] sm:$0x1]
        %v2048 = vlaneseq
        %v2049 = vshrl.u32 %v2048, 7
        %v2050 = vsub.s32 0, %v2049
        %v2051 = vrot.slane %v2047, %v2050
        %v2068 = vunpack.c.l.b16 %v2031
        %v2069 = vunpack.c.l.b16 %v2032
        %v2070 = vunpack.c.l.b16 %v2033
        %v2071 = vunpack.c.l.b16 %v2034
        %v2072 = vunpack.c.l.b16 %v2035
        %v2073 = vunpack.c.l.b16 %v2036
        %v2074 = vunpack.c.l.b16 %v2037
        %v2075 = vunpack.c.l.b16 %v2038
        %v2076 = vunpack.c.l.b16 %v2039
        %v2077 = vunpack.c.l.b16 %v2040
        %v2078 = vunpack.c.l.b16 %v2041
        %v2079 = vunpack.c.l.b16 %v2042
        %v2080 = vunpack.c.l.b16 %v2043
        %v2081 = vunpack.c.l.b16 %v2044
        %v2082 = vunpack.c.l.b16 %v2045
        %v2083 = vunpack.c.l.b16 %v2046
        %v2084 = vpack.c.b16 %v2069, %v2068
        %v2085 = vpack.c.b16 %v2071, %v2070
        %v2086 = vpack.c.b16 %v2073, %v2072
        %v2087 = vpack.c.b16 %v2075, %v2074
        %v2088 = vpack.c.b16 %v2077, %v2076
        %v2089 = vpack.c.b16 %v2079, %v2078
        %v2090 = vpack.c.b16 %v2081, %v2080
        %v2091 = vpack.c.b16 %v2083, %v2082
        %2100 = vmatprep.subr.bf16.mxu0 0
        %2101 = vmatpush1.bf16.msra.mxu0 %v2084
        %2102 = vmatprep.subr.bf16.mxu0 0
        %2103 = vmatpush1.bf16.msra.mxu0 %v2085
        %2104 = vmatprep.subr.bf16.mxu0 0
        %2105 = vmatpush1.bf16.msra.mxu0 %v2086
        %2106 = vmatprep.subr.bf16.mxu0 0
        %2107 = vmatpush1.bf16.msra.mxu0 %v2087
        %2108 = vmatprep.subr.bf16.mxu0 0
        %2109 = vmatpush1.bf16.msra.mxu0 %v2088
        %2110 = vmatprep.subr.bf16.mxu0 0
        %2111 = vmatpush1.bf16.msra.mxu0 %v2089
        %2112 = vmatprep.subr.bf16.mxu0 0
        %2113 = vmatpush1.bf16.msra.mxu0 %v2090
        %2114 = vmatprep.subr.bf16.mxu0 0
        %2115 = vmatpush1.bf16.msra.mxu0 %v2091
        %2116 = vmatprep.subr.bf16.mxu0 0
        %2117 = vmatpush1.bf16.msra.mxu0 0
        %2118 = vmatprep.subr.bf16.mxu0 0
        %2119 = vmatpush1.bf16.msra.mxu0 0
        %2120 = vmatprep.subr.bf16.mxu0 0
        %2121 = vmatpush1.bf16.msra.mxu0 0
        %2122 = vmatprep.subr.bf16.mxu0 0
        %2123 = vmatpush1.bf16.msra.mxu0 0
        %2124 = vmatprep.subr.bf16.mxu0 0
        %2125 = vmatpush1.bf16.msra.mxu0 0
        %2126 = vmatprep.subr.bf16.mxu0 0
        %2127 = vmatpush1.bf16.msra.mxu0 0
        %2128 = vmatprep.subr.bf16.mxu0 0
        %2129 = vmatpush1.bf16.msra.mxu0 0
        %2130 = vmatprep.subr.bf16.mxu0 0
        %2131 = vmatpush1.bf16.msra.mxu0 0
        %2132 = vmatprep.mubr.bf16.mxu0 0
        %2133 = vmatmul.mubr.bf16.gmra.mrb[0].mxu0 %v2030
        %v2134 = vpop.f32.mrb[0].mxu0
        %v2135 = vadd.f32 %v2051, %v2134
        %v2136 = vpop.f32.mrb[0].mxu0
        %v2137 = vpop.f32.mrb[0].mxu0
        %v2138 = vadd.f32 %v2051, %v2137
        %v2139 = vpop.f32.mrb[0].mxu0
        %2140 = vdwg.mxu0
        %2141 = vmax.xlane.f32.xlu0 %v2135
        %v2142 = vpop.xlane.xlu0 %2141
        %2143 = vmax.xlane.f32.xlu0 %v2138
        %v2144 = vpop.xlane.xlu0 %2143
        %v2145 = vsub.f32 %v2135, %v2142
        %v2146 = vsub.f32 %v2138, %v2144
        %v2147 = vmul.f32 %v2145, 1.442695
        %v2148 = vpow.pop %v2147
        %v2149 = vmul.f32 %v2146, 1.442695
        %v2150 = vpow.pop %v2149
        %2151 = vadd.xlane.f32.xlu0 %v2148
        %v2152 = vpop.xlane.xlu0 %2151
        %2153 = vadd.xlane.f32.xlu0 %v2150
        %v2154 = vpop.xlane.xlu0 %2153
        %v2155 = vrcp.pop %v2152
        %v2156 = vrcp.pop %v2154
        %v2157 = vmul.f32 %v2148, %v2155
        %v2158 = vmul.f32 %v2150, %v2156
        %2160 = vset.pattern.permute.xlu0 0
        %2161 = vperm.xlu0 %2160, %v2157
        %v2162 = vpop.permute.xlu0 %2161
        %2165 = vset.pattern.permute.xlu0 0
        %2166 = vperm.xlu0 %2165, %v2158
        %v2167 = vpop.permute.xlu0 %2166
        %v2169 = vmul.f32 %v2162, %v1095
        %v2170 = vmul.f32 %v2167, %v1098
        %2171 = vset.pattern.permute.xlu0 1
        %2172 = vperm.xlu0 %2171, %v2157
        %v2173 = vpop.permute.xlu0 %2172
        %2175 = vset.pattern.permute.xlu0 1
        %2176 = vperm.xlu0 %2175, %v2158
        %v2177 = vpop.permute.xlu0 %2176
        %v2179 = vmul.f32 %v2173, %v1642
        %v2180 = vmul.f32 %v2177, %v1645
        %v2181 = vadd.f32 %v2169, %v2179
        %v2182 = vadd.f32 %v2170, %v2180
        %2183 = vset.pattern.permute.xlu0 2
        %2184 = vperm.xlu0 %2183, %v2157
        %v2185 = vpop.permute.xlu0 %2184
        %2187 = vset.pattern.permute.xlu0 2
        %2188 = vperm.xlu0 %2187, %v2158
        %v2189 = vpop.permute.xlu0 %2188
        %v2191 = vmul.f32 %v2185, %v1695
        %v2192 = vmul.f32 %v2189, %v1698
        %v2193 = vadd.f32 %v2181, %v2191
        %v2194 = vadd.f32 %v2182, %v2192
        %2195 = vst [vmem:[%s287] sm:$0xff] %v2193
        %2196 = vst [vmem:[%s287 + $0x8] sm:$0xff] %v2194
        %s2197 = sand.u32 %s151, 1
        %s2198 = scalar_lea.sflag [#allocation4], %s2197
        %s2199 = sand.u32 %s151, 1
        %s2200 = smul.addr %s2199, 16
        %s2201 = scalar_lea.vmem [#allocation7], %s2200
        // Predicated region
        $region49: #{tpu_custom_call.1} parent=39 // pred_check
          %p2202 = pneg %p161
        $region50: #{tpu_custom_call.1} parent=39 // pred_check_branch
          %2204 = sbr.rel (%p2202) target = $region52
        $region51: #{tpu_custom_call.1} parent=39 // pred_region
          %s2205 = smul.u32 2, %s23
          %s2207 = ssub.s32 256, 256
          %2208 = vsyncadd %s2198, %s2207
          %s2209 = smul.addr %s2205, 128
          %s2210 = scalar_lea.hbm %s5, %s2209
          %s2211 = sshll.u32 %s2201, 4
          %s2212 = int_to_ptr.vmem [resolvable:$true] %s2211
          %2217 = dma.vmem_to_hbm [thread:$0]  %s2212, 256, %s2210, %s2198, 128, 128, 8
        $region52: #{tpu_custom_call.1} parent=39 // pred_fallthru
          _
      $region40: #{tpu_custom_call.1} parent=5 // pred_fallthru
        _
      %p2218 = scmp.le.s32.totalorder 2, %s18
      // Predicated region
      $region53: #{tpu_custom_call.1} parent=5 // pred_check
        %p2219 = pneg %p2218
      $region54: #{tpu_custom_call.1} parent=5 // pred_check_branch
        %2221 = sbr.rel (%p2219) target = $region56
      $region55: #{tpu_custom_call.1} parent=5 // pred_region
        %s2222 = ssub.s32 %s18, 2
        // Predicated region
        $region57: #{tpu_custom_call.1} parent=55 // pred_check
          %p2223 = pneg %p167
        $region58: #{tpu_custom_call.1} parent=55 // pred_check_branch
          %2225 = sbr.rel (%p2223) target = $region60
        $region59: #{tpu_custom_call.1} parent=55 // pred_region
          %s2226 = sand.u32 %s152, 1
          %s2227 = scalar_lea.sflag [#allocation4], %s2226
          %s2228 = sand.u32 %s152, 1
          %s2229 = smul.addr %s2228, 16
          %s2230 = scalar_lea.vmem [#allocation7], %s2229
          %2231 = dma.done %s2227, 256
        $region60: #{tpu_custom_call.1} parent=55 // pred_fallthru
          _
      $region56: #{tpu_custom_call.1} parent=5 // pred_fallthru
        _
    $region6: #{tpu_custom_call.1} parent=1 // loop_footer
      %s22 = sadd.s32 1, %s18
    $region7: #{tpu_custom_call.1} parent=1 // loop_footer_branch
      %17 = sbr.rel target = $region3
    $region8: #{tpu_custom_call.1} parent=1 // loop_exit
      _
    %2232 = vsyncpa [#allocation3], 1
    %s2233 = scalar_lea.sflag [#allocation3], 1
    %2234 = vsyncpa %s2233, 1
    %2235 = vsyncpa [#allocation6], 1
    %2236 = vsyncpa [#allocation4], 1
    %s2237 = scalar_lea.sflag [#allocation4], 1
    %2238 = vsyncpa %s2237, 1

</llo_original>
